<compile_context>
chip_gen: v7x
topology: tpu7x:2x2x1
jax: 0.10.0
libtpu: 0.0.40
codegen_flags: <defaults>
</compile_context>

<pallas_src>
import functools

import jax
import jax.numpy as jnp
from jax import lax
from jax.experimental import pallas as pl
from jax.experimental.pallas import tpu as pltpu  # noqa: F401 (TPU backend)

LANES = 128  # lane width of the packed f32 constants buffer


# ---------------------------------------------------------------------------
# Fused kernel: encoder (N transformer blocks) + classifier head.
# ---------------------------------------------------------------------------
def fused_transformer_kernel(z_ref, wpack_ref, cpack_ref, out_ref, *,
                             n, l, h, d_int, d_ff, n_layers, offsets,
                             eps=1e-5):
    d = h * d_int            # d_model
    nl = n * l               # folded batch*seq rows
    hk = h * nl              # all-head score columns
    inv_sqrt = 1.0 / (float(d_int) ** 0.5)

    def cget(name):
        r0, nr, nc = offsets[name]          # static Python ints
        v = cpack_ref[pl.ds(r0, nr), :]     # (nr, LANES) f32
        return v[:, :nc]

    # --- constants, loaded once (all selectors precomputed on the host) -----
    rep      = cget("rep")           # (hk, nl)  K-row replicator
    colmask  = cget("colmask")       # (hk, d)   per-head column mask
    gsum     = cget("gsum")          # (hk, h)   per-head denominator selector
    headsum  = cget("headsum")       # (d, h)    per-head diag selector / expander
    batchsel = cget("batchsel")      # (n, nl)   batch row selector (pred head)
    bias_s   = cget("bias_tiled")    # (nl, hk)  additive mask bias on scores
    bias_d   = cget("bias_diag")     # (nl, 1)   additive mask bias on diagonal
    wpred    = cget("wpred")         # (nl, d)   prediction weight per folded row
    pred_b   = cget("predb")         # (1, 1)
    lp       = cget("layer_params")  # (2*n_layers, LANES) LN gammas/betas, FFN biases

    def layer_norm(x, gamma, beta):
        mu = jnp.mean(x, axis=-1, keepdims=True)
        var = jnp.mean((x - mu) ** 2, axis=-1, keepdims=True)
        return (x - mu) * lax.rsqrt(var + eps) * gamma + beta

    z = z_ref[...]                   # (nl, d) f32; encoder dropout = identity

    for li in range(n_layers):       # static unroll; everything stays in VMEM
        # ---- carve this layer's bf16 weight slab (static value slices) ----
        slab = wpack_ref[li]                                 # (d, 4d+2*d_ff) bf16
        wqkv = slab[:, 0:3 * d]
        wo = slab[:, 3 * d:4 * d]
        w1 = slab[:, 4 * d:4 * d + d_ff]
        w2t = slab[:, 4 * d + d_ff:4 * d + 2 * d_ff]         # (d, d_ff) == W2^T

        row_a = lp[2 * li:2 * li + 1, :]
        row_b = lp[2 * li + 1:2 * li + 2, :]
        g1, bt1 = row_a[:, 0:d], row_a[:, d:2 * d]
        g2, bt2 = row_a[:, 2 * d:3 * d], row_a[:, 3 * d:4 * d]
        b1, b2 = row_b[:, 0:d_ff], row_b[:, d_ff:d_ff + d]

        # ---- fused QKV projection (bf16 MXU, f32 accumulate, no bias) ----
        qkv = jnp.dot(z.astype(jnp.bfloat16), wqkv,
                      preferred_element_type=jnp.float32)     # (nl, 3d) f32
        q, k, v = qkv[:, 0:d], qkv[:, d:2 * d], qkv[:, 2 * d:3 * d]

        # ---- diagonal scores (the 'nhll,nlhd' einsum only needs these) ----
        diag_s = (jnp.dot(q * k, headsum, preferred_element_type=jnp.float32)
                  * inv_sqrt + bias_d)                        # (nl, h)

        # ---- all-head scores: replicate+mask K with one MXU matmul (no k.T,
        #      no concatenate), then contract last-with-last via dot_general.
        k_rep = jnp.dot(rep, k, preferred_element_type=jnp.float32) * colmask  # (hk, d)
        scores = lax.dot_general(
            q.astype(jnp.bfloat16), k_rep.astype(jnp.bfloat16),
            dimension_numbers=(((1,), (1,)), ((), ())),
            preferred_element_type=jnp.float32) * inv_sqrt + bias_s            # (nl, hk)

        # ---- per-head softmax stats.  The per-row max over ALL heads is a
        #      valid stabilizer only because the SAME m is applied to both the
        #      diagonal numerator and each head's denominator; keep consistent.
        m = jnp.max(scores, axis=-1, keepdims=True)           # (nl, 1)
        e = jnp.exp(scores - m)                               # (nl, hk) f32
        denom = jnp.dot(e, gsum, preferred_element_type=jnp.float32)  # (nl, h)
        # Precondition: every query row has >=1 unmasked key (always true for
        # causal masks: the diagonal is never masked), so denom > 0.
        coeff = jnp.exp(diag_s - m) * pl.reciprocal(denom, approx=True)  # (nl, h)

        # ---- y_bar = diag(softmax) * V; expand coeff per head via dot_general
        #      against headsum (== expander^T), no concatenate ----
        y_bar = v * lax.dot_general(coeff, headsum,
                                    dimension_numbers=(((1,), (1,)), ((), ())),
                                    preferred_element_type=jnp.float32)  # (nl, d)
        after_rho = jnp.dot(y_bar.astype(jnp.bfloat16), wo,
                            preferred_element_type=jnp.float32)

        # ---- residual + LayerNorm + FFN + residual + LayerNorm (f32 math) ----
        y = layer_norm(after_rho + z, g1, bt1)
        hid = jnp.maximum(
            jnp.dot(y.astype(jnp.bfloat16), w1,
                    preferred_element_type=jnp.float32) + b1, 0.0)
        ff = lax.dot_general(hid.astype(jnp.bfloat16), w2t,
                             dimension_numbers=(((1,), (1,)), ((), ())),
                             preferred_element_type=jnp.float32) + b2
        z = layer_norm(ff + y, g2, bt2)

    # ---- prediction head: out[b] = sum_{l,d} z[b] * W_pred + b_pred ----
    prod = z * wpred                                                  # (nl, d)
    bsum = jnp.dot(batchsel, prod, preferred_element_type=jnp.float32)  # (n, d)
    out_ref[...] = jnp.sum(bsum, axis=-1, keepdims=True) + pred_b     # (n, 1)


# ---------------------------------------------------------------------------
# One-time host setup: pack all weights / constants into two buffers.
# ---------------------------------------------------------------------------
def _pack_constants(pieces, n_cols=LANES, row_align=8):
    """Stack 2-D f32 pieces along rows (8-row aligned) into one (R, 128) buffer."""
    offsets, r = {}, 0
    for name, arr in pieces.items():
        nr, nc = arr.shape
        assert nc <= n_cols, (name, nc)
        offsets[name] = (r, nr, nc)
        r += ((nr + row_align - 1) // row_align) * row_align
    buf = jnp.zeros((r, n_cols), jnp.float32)
    for name, arr in pieces.items():
        r0, nr, nc = offsets[name]
        buf = buf.at[r0:r0 + nr, :nc].set(jnp.asarray(arr, jnp.float32))
    return buf, offsets


def build_operands(params, mask, n, l, d, h, d_ff):
    """Run ONCE at setup (outside the per-call path)."""
    n_layers = params["wqkv"].shape[0]
    d_int = d // h
    nl, hk = n * l, h * n * l
    NEG = jnp.float32(-1e30)

    # --- bf16 weight pack: per-layer slab [wqkv | wo | w1 | w2^T] ----------
    w2t = jnp.transpose(params["w2"], (0, 2, 1))                      # (N, d, d_ff)
    wpack = jnp.concatenate(
        [params["wqkv"], params["wo"], params["w1"], w2t],
        axis=2).astype(jnp.bfloat16)                                  # (N, d, 4d+2d_ff)

    # --- selector matrices (precomputed; no in-kernel iota) ----------------
    ar = jnp.arange
    headsum = (ar(d)[:, None] // d_int == ar(h)[None, :]).astype(jnp.float32)
    gsum = (ar(hk)[:, None] // nl == ar(h)[None, :]).astype(jnp.float32)
    rep = (ar(hk)[:, None] % nl == ar(nl)[None, :]).astype(jnp.float32)
    colmask = (ar(d)[None, :] // d_int == ar(hk)[:, None] // nl).astype(jnp.float32)
    batchsel = (ar(n)[:, None] == ar(nl)[None, :] // l).astype(jnp.float32)

    # --- additive mask bias (hoisted out of the per-call jitted path) ------
    rows = jnp.arange(nl)
    rb, cb = rows[:, None] // l, rows[None, :] // l
    rl, cl = rows[:, None] % l, rows[None, :] % l
    mask_pair = mask[rb, rl, cl]                                      # (nl, nl)
    bias_full = jnp.where((rb == cb) & (mask_pair != 0), 0.0, NEG)
    bias_tiled = jnp.tile(bias_full.astype(jnp.float32), (1, h))      # (nl, hk)
    bias_diag = jnp.where(jnp.diagonal(mask, axis1=1, axis2=2) != 0,
                          0.0, NEG).astype(jnp.float32).reshape(nl, 1)

    # --- prediction weight laid out per folded row (l-major, d-minor) ------
    wpred = jnp.tile(params["pred_w"].reshape(l, d), (n, 1))          # (nl, d)

    # --- per-layer LayerNorm / FFN-bias rows --------------------------------
    assert 4 * d <= LANES and d_ff + d <= LANES
    lp_rows = []
    for li in range(n_layers):
        row_a = jnp.concatenate([params["g1"][li, 0], params["bt1"][li, 0],
                                 params["g2"][li, 0], params["bt2"][li, 0]])
        row_b = jnp.concatenate([params["b1"][li, 0], params["b2"][li, 0]])
        lp_rows.append(jnp.pad(row_a, (0, LANES - row_a.shape[0])))
        lp_rows.append(jnp.pad(row_b, (0, LANES - row_b.shape[0])))
    layer_params = jnp.stack(lp_rows)                                 # (2N, LANES)

    pieces = {
        "rep": rep, "colmask": colmask, "gsum": gsum, "headsum": headsum,
        "batchsel": batchsel, "bias_tiled": bias_tiled, "bias_diag": bias_diag,
        "wpred": wpred, "predb": params["pred_b"], "layer_params": layer_params,
    }
    cpack, offsets = _pack_constants(pieces)
    return wpack, cpack, offsets


# ---------------------------------------------------------------------------
# Per-call forward: one pallas_call, three operands, no grid.
# ---------------------------------------------------------------------------
def make_transformer_forward(n, l, d, h, d_ff, n_layers, offsets):
    kernel = functools.partial(
        fused_transformer_kernel, n=n, l=l, h=h, d_int=d // h,
        d_ff=d_ff, n_layers=n_layers, offsets=offsets)
    call = pl.pallas_call(
        kernel,
        out_shape=jax.ShapeDtypeStruct((n, 1), jnp.float32),
        # No grid: single step, everything resident in VMEM (~200 KB).
        # TODO(synk): for much larger N / d_model on v7x (64 MiB VMEM), switch
        # to grid=(n_layers,) with per-layer BlockSpecs so weights stream.
    )

    def forward(x, wpack, cpack):
        return call(x.reshape(n * l, d), wpack, cpack)

    return jax.jit(forward)


# ---------------------------------------------------------------------------
# Parameter init (stacked per-layer weights, "x @ W" layout).
# ---------------------------------------------------------------------------
def init_params(key, d_model, N, d_ff, h, l_max):
    def nrm(k, shape, scale=0.02):
        return (scale * jax.random.normal(k, shape)).astype(jnp.float32)

    wqkv, wo, w1, w2 = [], [], [], []
    for _ in range(N):
        key, *ks = jax.random.split(key, 7)
        wqkv.append(jnp.concatenate(
            [nrm(ks[0], (d_model, d_model)),
             nrm(ks[1], (d_model, d_model)),
             nrm(ks[2], (d_model, d_model))], axis=1))
        wo.append(nrm(ks[3], (d_model, d_model)))
        w1.append(nrm(ks[4], (d_model, d_ff)))
        w2.append(nrm(ks[5], (d_ff, d_model)))
    key, kp = jax.random.split(key)
    return dict(
        wqkv=jnp.stack(wqkv),                            # (N, d, 3d)
        wo=jnp.stack(wo),                                # (N, d, d)
        g1=jnp.ones((N, 1, d_model), jnp.float32),
        bt1=jnp.zeros((N, 1, d_model), jnp.float32),
        g2=jnp.ones((N, 1, d_model), jnp.float32),
        bt2=jnp.zeros((N, 1, d_model), jnp.float32),
        w1=jnp.stack(w1),                                # (N, d, d_ff)
        b1=jnp.zeros((N, 1, d_ff), jnp.float32),
        w2=jnp.stack(w2),                                # (N, d_ff, d)
        b2=jnp.zeros((N, 1, d_model), jnp.float32),
        pred_w=nrm(kp, (1, d_model * l_max)),
        pred_b=jnp.zeros((1, 1), jnp.float32),
    )


if __name__ == "__main__":
    # Transformer(d_model=32, N=2, d_ff=64, h=4, l_max=8, dropout=0.0)
    d_model, N, d_ff, h, l_max = 32, 2, 64, 4, 8
    n = 2

    key = jax.random.PRNGKey(0)
    key, kx = jax.random.split(key)
    x = jax.random.normal(kx, (n, l_max, d_model), jnp.float32)

    # Causal mask; corresponds to a torch mask of shape (n, 1, l, l).
    mask = jnp.tril(jnp.ones((l_max, l_max), jnp.float32))
    mask = jnp.broadcast_to(mask, (n, l_max, l_max))

    params = init_params(key, d_model, N, d_ff, h, l_max)

    # One-time setup: pack weights, selectors and the (static) mask bias.
    wpack, cpack, offsets = build_operands(params, mask, n, l_max, d_model, h, d_ff)

    fwd = make_transformer_forward(n, l_max, d_model, h, d_ff, N, offsets)
    out = jax.block_until_ready(fwd(x, wpack, cpack))
    assert out.shape == (n, 1)
    print("KERNEL_OK")
</pallas_src>

<mosaic_0001>
module attributes {stable_mosaic.version = 11 : i64} {
  func.func @fused_transformer_kernel(%arg0: memref<16x32xf32, #tpu.memory_space<vmem>>, %arg1: memref<2x32x256xbf16, #tpu.memory_space<vmem>>, %arg2: memref<296x128xf32, #tpu.memory_space<vmem>>, %arg3: memref<2x1xf32, #tpu.memory_space<vmem>>) attributes {dimension_semantics = [], scalar_prefetch = 0 : i64, scratch_operands = 0 : i64, tpu.core_type = #tpu.core_type<tc>} {
    %c0 = arith.constant 0 : index
    %c0_0 = arith.constant 0 : index
    %0 = vector.load %arg2[%c0, %c0_0] : memref<296x128xf32, #tpu.memory_space<vmem>>, vector<64x128xf32>
    %1 = vector.extract_strided_slice %0 {offsets = [0, 0], sizes = [64, 16], strides = [1, 1]} : vector<64x128xf32> to vector<64x16xf32>
    %c64 = arith.constant 64 : index
    %c0_1 = arith.constant 0 : index
    %2 = vector.load %arg2[%c64, %c0_1] : memref<296x128xf32, #tpu.memory_space<vmem>>, vector<64x128xf32>
    %3 = vector.extract_strided_slice %2 {offsets = [0, 0], sizes = [64, 32], strides = [1, 1]} : vector<64x128xf32> to vector<64x32xf32>
    %c128 = arith.constant 128 : index
    %c0_2 = arith.constant 0 : index
    %4 = vector.load %arg2[%c128, %c0_2] : memref<296x128xf32, #tpu.memory_space<vmem>>, vector<64x128xf32>
    %5 = vector.extract_strided_slice %4 {offsets = [0, 0], sizes = [64, 4], strides = [1, 1]} : vector<64x128xf32> to vector<64x4xf32>
    %c192 = arith.constant 192 : index
    %c0_3 = arith.constant 0 : index
    %6 = vector.load %arg2[%c192, %c0_3] : memref<296x128xf32, #tpu.memory_space<vmem>>, vector<32x128xf32>
    %7 = vector.extract_strided_slice %6 {offsets = [0, 0], sizes = [32, 4], strides = [1, 1]} : vector<32x128xf32> to vector<32x4xf32>
    %c224 = arith.constant 224 : index
    %c0_4 = arith.constant 0 : index
    %8 = vector.load %arg2[%c224, %c0_4] : memref<296x128xf32, #tpu.memory_space<vmem>>, vector<2x128xf32>
    %9 = vector.extract_strided_slice %8 {offsets = [0, 0], sizes = [2, 16], strides = [1, 1]} : vector<2x128xf32> to vector<2x16xf32>
    %c232 = arith.constant 232 : index
    %c0_5 = arith.constant 0 : index
    %10 = vector.load %arg2[%c232, %c0_5] : memref<296x128xf32, #tpu.memory_space<vmem>>, vector<16x128xf32>
    %11 = vector.extract_strided_slice %10 {offsets = [0, 0], sizes = [16, 64], strides = [1, 1]} : vector<16x128xf32> to vector<16x64xf32>
    %c248 = arith.constant 248 : index
    %c0_6 = arith.constant 0 : index
    %12 = vector.load %arg2[%c248, %c0_6] : memref<296x128xf32, #tpu.memory_space<vmem>>, vector<16x128xf32>
    %13 = vector.extract_strided_slice %12 {offsets = [0, 0], sizes = [16, 1], strides = [1, 1]} : vector<16x128xf32> to vector<16x1xf32>
    %c264 = arith.constant 264 : index
    %c0_7 = arith.constant 0 : index
    %14 = vector.load %arg2[%c264, %c0_7] : memref<296x128xf32, #tpu.memory_space<vmem>>, vector<16x128xf32>
    %15 = vector.extract_strided_slice %14 {offsets = [0, 0], sizes = [16, 32], strides = [1, 1]} : vector<16x128xf32> to vector<16x32xf32>
    %c280 = arith.constant 280 : index
    %c0_8 = arith.constant 0 : index
    %16 = vector.load %arg2[%c280, %c0_8] : memref<296x128xf32, #tpu.memory_space<vmem>>, vector<1x128xf32>
    %17 = vector.extract_strided_slice %16 {offsets = [0, 0], sizes = [1, 1], strides = [1, 1]} : vector<1x128xf32> to vector<1x1xf32>
    %c288 = arith.constant 288 : index
    %c0_9 = arith.constant 0 : index
    %18 = vector.load %arg2[%c288, %c0_9] : memref<296x128xf32, #tpu.memory_space<vmem>>, vector<4x128xf32>
    %c0_10 = arith.constant 0 : index
    %c0_11 = arith.constant 0 : index
    %19 = vector.load %arg0[%c0_10, %c0_11] : memref<16x32xf32, #tpu.memory_space<vmem>>, vector<16x32xf32>
    %c0_12 = arith.constant 0 : index
    %c0_13 = arith.constant 0 : index
    %c0_14 = arith.constant 0 : index
    %20 = vector.load %arg1[%c0_12, %c0_13, %c0_14] : memref<2x32x256xbf16, #tpu.memory_space<vmem>>, vector<1x32x256xbf16>
    %21 = vector.shape_cast %20 : vector<1x32x256xbf16> to vector<32x256xbf16>
    %22 = vector.extract_strided_slice %21 {offsets = [0, 0], sizes = [32, 96], strides = [1, 1]} : vector<32x256xbf16> to vector<32x96xbf16>
    %23 = vector.extract_strided_slice %21 {offsets = [0, 96], sizes = [32, 32], strides = [1, 1]} : vector<32x256xbf16> to vector<32x32xbf16>
    %24 = vector.extract_strided_slice %21 {offsets = [0, 128], sizes = [32, 64], strides = [1, 1]} : vector<32x256xbf16> to vector<32x64xbf16>
    %25 = vector.extract_strided_slice %21 {offsets = [0, 192], sizes = [32, 64], strides = [1, 1]} : vector<32x256xbf16> to vector<32x64xbf16>
    %26 = vector.extract_strided_slice %18 {offsets = [0, 0], sizes = [1, 128], strides = [1, 1]} : vector<4x128xf32> to vector<1x128xf32>
    %27 = vector.extract_strided_slice %18 {offsets = [1, 0], sizes = [1, 128], strides = [1, 1]} : vector<4x128xf32> to vector<1x128xf32>
    %28 = vector.extract_strided_slice %26 {offsets = [0, 0], sizes = [1, 32], strides = [1, 1]} : vector<1x128xf32> to vector<1x32xf32>
    %29 = vector.extract_strided_slice %26 {offsets = [0, 32], sizes = [1, 32], strides = [1, 1]} : vector<1x128xf32> to vector<1x32xf32>
    %30 = vector.extract_strided_slice %26 {offsets = [0, 64], sizes = [1, 32], strides = [1, 1]} : vector<1x128xf32> to vector<1x32xf32>
    %31 = vector.extract_strided_slice %26 {offsets = [0, 96], sizes = [1, 32], strides = [1, 1]} : vector<1x128xf32> to vector<1x32xf32>
    %32 = vector.extract_strided_slice %27 {offsets = [0, 0], sizes = [1, 64], strides = [1, 1]} : vector<1x128xf32> to vector<1x64xf32>
    %33 = vector.extract_strided_slice %27 {offsets = [0, 64], sizes = [1, 32], strides = [1, 1]} : vector<1x128xf32> to vector<1x32xf32>
    %34 = arith.truncf %19 : vector<16x32xf32> to vector<16x32xbf16>
    %cst = arith.constant dense<0.000000e+00> : vector<16x96xf32>
    %35 = tpu.matmul %34, %22, %cst {dimension_numbers = #tpu.dot_dimension_numbers<[1], [0], [0], [1], [0, 0, 1, 1], [], []>} : vector<16x32xbf16>, vector<32x96xbf16>, vector<16x96xf32> -> vector<16x96xf32>
    %36 = vector.extract_strided_slice %35 {offsets = [0, 0], sizes = [16, 32], strides = [1, 1]} : vector<16x96xf32> to vector<16x32xf32>
    %37 = vector.extract_strided_slice %35 {offsets = [0, 32], sizes = [16, 32], strides = [1, 1]} : vector<16x96xf32> to vector<16x32xf32>
    %38 = vector.extract_strided_slice %35 {offsets = [0, 64], sizes = [16, 32], strides = [1, 1]} : vector<16x96xf32> to vector<16x32xf32>
    %39 = arith.mulf %36, %37 : vector<16x32xf32>
    %cst_15 = arith.constant dense<0.000000e+00> : vector<16x4xf32>
    %40 = tpu.matmul %39, %7, %cst_15 {dimension_numbers = #tpu.dot_dimension_numbers<[1], [0], [0], [1], [0, 0, 1, 1], [], []>} : vector<16x32xf32>, vector<32x4xf32>, vector<16x4xf32> -> vector<16x4xf32>
    %cst_16 = arith.constant 0.353553385 : f32
    %41 = vector.broadcast %cst_16 : f32 to vector<16x4xf32>
    %42 = arith.mulf %40, %41 : vector<16x4xf32>
    %43 = vector.broadcast %13 : vector<16x1xf32> to vector<16x4xf32>
    %44 = arith.addf %42, %43 : vector<16x4xf32>
    %cst_17 = arith.constant dense<0.000000e+00> : vector<64x32xf32>
    %45 = tpu.matmul %1, %37, %cst_17 {dimension_numbers = #tpu.dot_dimension_numbers<[1], [0], [0], [1], [0, 0, 1, 1], [], []>} : vector<64x16xf32>, vector<16x32xf32>, vector<64x32xf32> -> vector<64x32xf32>
    %46 = arith.mulf %45, %3 : vector<64x32xf32>
    %47 = arith.truncf %36 : vector<16x32xf32> to vector<16x32xbf16>
    %48 = arith.truncf %46 : vector<64x32xf32> to vector<64x32xbf16>
    %cst_18 = arith.constant dense<0.000000e+00> : vector<16x64xf32>
    %49 = tpu.matmul %47, %48, %cst_18 {dimension_numbers = #tpu.dot_dimension_numbers<[1], [1], [0], [0], [0, 0, 1, 0], [], []>} : vector<16x32xbf16>, vector<64x32xbf16>, vector<16x64xf32> -> vector<16x64xf32>
    %cst_19 = arith.constant 0.353553385 : f32
    %50 = vector.broadcast %cst_19 : f32 to vector<16x64xf32>
    %51 = arith.mulf %49, %50 : vector<16x64xf32>
    %52 = arith.addf %51, %11 : vector<16x64xf32>
    %cst_20 = arith.constant dense<0xFF800000> : vector<16xf32>
    %53 = vector.multi_reduction <maximumf>, %52, %cst_20 [1] : vector<16x64xf32> to vector<16xf32>
    %54 = vector.shape_cast %53 : vector<16xf32> to vector<16x1xf32>
    %55 = vector.broadcast %54 : vector<16x1xf32> to vector<16x64xf32>
    %56 = arith.subf %52, %55 : vector<16x64xf32>
    %57 = math.exp %56 : vector<16x64xf32>
    %cst_21 = arith.constant dense<0.000000e+00> : vector<16x4xf32>
    %58 = tpu.matmul %57, %5, %cst_21 {dimension_numbers = #tpu.dot_dimension_numbers<[1], [0], [0], [1], [0, 0, 1, 1], [], []>} : vector<16x64xf32>, vector<64x4xf32>, vector<16x4xf32> -> vector<16x4xf32>
    %59 = vector.broadcast %54 : vector<16x1xf32> to vector<16x4xf32>
    %60 = arith.subf %44, %59 : vector<16x4xf32>
    %61 = math.exp %60 : vector<16x4xf32>
    %62 = tpu.reciprocal %58 {approx = true} : vector<16x4xf32> -> vector<16x4xf32>
    %63 = arith.mulf %61, %62 : vector<16x4xf32>
    %cst_22 = arith.constant dense<0.000000e+00> : vector<16x32xf32>
    %64 = tpu.matmul %63, %7, %cst_22 {dimension_numbers = #tpu.dot_dimension_numbers<[1], [1], [0], [0], [0, 0, 1, 0], [], []>} : vector<16x4xf32>, vector<32x4xf32>, vector<16x32xf32> -> vector<16x32xf32>
    %65 = arith.mulf %38, %64 : vector<16x32xf32>
    %66 = arith.truncf %65 : vector<16x32xf32> to vector<16x32xbf16>
    %cst_23 = arith.constant dense<0.000000e+00> : vector<16x32xf32>
    %67 = tpu.matmul %66, %23, %cst_23 {dimension_numbers = #tpu.dot_dimension_numbers<[1], [0], [0], [1], [0, 0, 1, 1], [], []>} : vector<16x32xbf16>, vector<32x32xbf16>, vector<16x32xf32> -> vector<16x32xf32>
    %68 = arith.addf %67, %19 : vector<16x32xf32>
    %cst_24 = arith.constant dense<0.000000e+00> : vector<16xf32>
    %69 = vector.multi_reduction <add>, %68, %cst_24 [1] : vector<16x32xf32> to vector<16xf32>
    %70 = vector.shape_cast %69 : vector<16xf32> to vector<16x1xf32>
    %cst_25 = arith.constant 3.200000e+01 : f32
    %71 = vector.broadcast %cst_25 : f32 to vector<16x1xf32>
    %72 = arith.divf %70, %71 : vector<16x1xf32>
    %73 = vector.broadcast %72 : vector<16x1xf32> to vector<16x32xf32>
    %74 = arith.subf %68, %73 : vector<16x32xf32>
    %75 = arith.mulf %74, %74 : vector<16x32xf32>
    %cst_26 = arith.constant dense<0.000000e+00> : vector<16xf32>
    %76 = vector.multi_reduction <add>, %75, %cst_26 [1] : vector<16x32xf32> to vector<16xf32>
    %77 = vector.shape_cast %76 : vector<16xf32> to vector<16x1xf32>
    %cst_27 = arith.constant 3.200000e+01 : f32
    %78 = vector.broadcast %cst_27 : f32 to vector<16x1xf32>
    %79 = arith.divf %77, %78 : vector<16x1xf32>
    %80 = vector.broadcast %72 : vector<16x1xf32> to vector<16x32xf32>
    %81 = arith.subf %68, %80 : vector<16x32xf32>
    %cst_28 = arith.constant 9.99999974E-6 : f32
    %82 = vector.broadcast %cst_28 : f32 to vector<16x1xf32>
    %83 = arith.addf %79, %82 : vector<16x1xf32>
    %84 = math.rsqrt %83 : vector<16x1xf32>
    %85 = vector.broadcast %84 : vector<16x1xf32> to vector<16x32xf32>
    %86 = arith.mulf %81, %85 : vector<16x32xf32>
    %87 = vector.broadcast %28 : vector<1x32xf32> to vector<16x32xf32>
    %88 = arith.mulf %86, %87 : vector<16x32xf32>
    %89 = vector.broadcast %29 : vector<1x32xf32> to vector<16x32xf32>
    %90 = arith.addf %88, %89 : vector<16x32xf32>
    %91 = arith.truncf %90 : vector<16x32xf32> to vector<16x32xbf16>
    %cst_29 = arith.constant dense<0.000000e+00> : vector<16x64xf32>
    %92 = tpu.matmul %91, %24, %cst_29 {dimension_numbers = #tpu.dot_dimension_numbers<[1], [0], [0], [1], [0, 0, 1, 1], [], []>} : vector<16x32xbf16>, vector<32x64xbf16>, vector<16x64xf32> -> vector<16x64xf32>
    %93 = vector.broadcast %32 : vector<1x64xf32> to vector<16x64xf32>
    %94 = arith.addf %92, %93 : vector<16x64xf32>
    %cst_30 = arith.constant 0.000000e+00 : f32
    %95 = vector.broadcast %cst_30 : f32 to vector<16x64xf32>
    %96 = arith.maximumf %94, %95 : vector<16x64xf32>
    %97 = arith.truncf %96 : vector<16x64xf32> to vector<16x64xbf16>
    %cst_31 = arith.constant dense<0.000000e+00> : vector<16x32xf32>
    %98 = tpu.matmul %97, %25, %cst_31 {dimension_numbers = #tpu.dot_dimension_numbers<[1], [1], [0], [0], [0, 0, 1, 0], [], []>} : vector<16x64xbf16>, vector<32x64xbf16>, vector<16x32xf32> -> vector<16x32xf32>
    %99 = vector.broadcast %33 : vector<1x32xf32> to vector<16x32xf32>
    %100 = arith.addf %98, %99 : vector<16x32xf32>
    %101 = arith.addf %100, %90 : vector<16x32xf32>
    %cst_32 = arith.constant dense<0.000000e+00> : vector<16xf32>
    %102 = vector.multi_reduction <add>, %101, %cst_32 [1] : vector<16x32xf32> to vector<16xf32>
    %103 = vector.shape_cast %102 : vector<16xf32> to vector<16x1xf32>
    %cst_33 = arith.constant 3.200000e+01 : f32
    %104 = vector.broadcast %cst_33 : f32 to vector<16x1xf32>
    %105 = arith.divf %103, %104 : vector<16x1xf32>
    %106 = vector.broadcast %105 : vector<16x1xf32> to vector<16x32xf32>
    %107 = arith.subf %101, %106 : vector<16x32xf32>
    %108 = arith.mulf %107, %107 : vector<16x32xf32>
    %cst_34 = arith.constant dense<0.000000e+00> : vector<16xf32>
    %109 = vector.multi_reduction <add>, %108, %cst_34 [1] : vector<16x32xf32> to vector<16xf32>
    %110 = vector.shape_cast %109 : vector<16xf32> to vector<16x1xf32>
    %cst_35 = arith.constant 3.200000e+01 : f32
    %111 = vector.broadcast %cst_35 : f32 to vector<16x1xf32>
    %112 = arith.divf %110, %111 : vector<16x1xf32>
    %113 = vector.broadcast %105 : vector<16x1xf32> to vector<16x32xf32>
    %114 = arith.subf %101, %113 : vector<16x32xf32>
    %cst_36 = arith.constant 9.99999974E-6 : f32
    %115 = vector.broadcast %cst_36 : f32 to vector<16x1xf32>
    %116 = arith.addf %112, %115 : vector<16x1xf32>
    %117 = math.rsqrt %116 : vector<16x1xf32>
    %118 = vector.broadcast %117 : vector<16x1xf32> to vector<16x32xf32>
    %119 = arith.mulf %114, %118 : vector<16x32xf32>
    %120 = vector.broadcast %30 : vector<1x32xf32> to vector<16x32xf32>
    %121 = arith.mulf %119, %120 : vector<16x32xf32>
    %122 = vector.broadcast %31 : vector<1x32xf32> to vector<16x32xf32>
    %123 = arith.addf %121, %122 : vector<16x32xf32>
    %c1 = arith.constant 1 : index
    %c0_37 = arith.constant 0 : index
    %c0_38 = arith.constant 0 : index
    %124 = vector.load %arg1[%c1, %c0_37, %c0_38] : memref<2x32x256xbf16, #tpu.memory_space<vmem>>, vector<1x32x256xbf16>
    %125 = vector.shape_cast %124 : vector<1x32x256xbf16> to vector<32x256xbf16>
    %126 = vector.extract_strided_slice %125 {offsets = [0, 0], sizes = [32, 96], strides = [1, 1]} : vector<32x256xbf16> to vector<32x96xbf16>
    %127 = vector.extract_strided_slice %125 {offsets = [0, 96], sizes = [32, 32], strides = [1, 1]} : vector<32x256xbf16> to vector<32x32xbf16>
    %128 = vector.extract_strided_slice %125 {offsets = [0, 128], sizes = [32, 64], strides = [1, 1]} : vector<32x256xbf16> to vector<32x64xbf16>
    %129 = vector.extract_strided_slice %125 {offsets = [0, 192], sizes = [32, 64], strides = [1, 1]} : vector<32x256xbf16> to vector<32x64xbf16>
    %130 = vector.extract_strided_slice %18 {offsets = [2, 0], sizes = [1, 128], strides = [1, 1]} : vector<4x128xf32> to vector<1x128xf32>
    %131 = vector.extract_strided_slice %18 {offsets = [3, 0], sizes = [1, 128], strides = [1, 1]} : vector<4x128xf32> to vector<1x128xf32>
    %132 = vector.extract_strided_slice %130 {offsets = [0, 0], sizes = [1, 32], strides = [1, 1]} : vector<1x128xf32> to vector<1x32xf32>
    %133 = vector.extract_strided_slice %130 {offsets = [0, 32], sizes = [1, 32], strides = [1, 1]} : vector<1x128xf32> to vector<1x32xf32>
    %134 = vector.extract_strided_slice %130 {offsets = [0, 64], sizes = [1, 32], strides = [1, 1]} : vector<1x128xf32> to vector<1x32xf32>
    %135 = vector.extract_strided_slice %130 {offsets = [0, 96], sizes = [1, 32], strides = [1, 1]} : vector<1x128xf32> to vector<1x32xf32>
    %136 = vector.extract_strided_slice %131 {offsets = [0, 0], sizes = [1, 64], strides = [1, 1]} : vector<1x128xf32> to vector<1x64xf32>
    %137 = vector.extract_strided_slice %131 {offsets = [0, 64], sizes = [1, 32], strides = [1, 1]} : vector<1x128xf32> to vector<1x32xf32>
    %138 = arith.truncf %123 : vector<16x32xf32> to vector<16x32xbf16>
    %cst_39 = arith.constant dense<0.000000e+00> : vector<16x96xf32>
    %139 = tpu.matmul %138, %126, %cst_39 {dimension_numbers = #tpu.dot_dimension_numbers<[1], [0], [0], [1], [0, 0, 1, 1], [], []>} : vector<16x32xbf16>, vector<32x96xbf16>, vector<16x96xf32> -> vector<16x96xf32>
    %140 = vector.extract_strided_slice %139 {offsets = [0, 0], sizes = [16, 32], strides = [1, 1]} : vector<16x96xf32> to vector<16x32xf32>
    %141 = vector.extract_strided_slice %139 {offsets = [0, 32], sizes = [16, 32], strides = [1, 1]} : vector<16x96xf32> to vector<16x32xf32>
    %142 = vector.extract_strided_slice %139 {offsets = [0, 64], sizes = [16, 32], strides = [1, 1]} : vector<16x96xf32> to vector<16x32xf32>
    %143 = arith.mulf %140, %141 : vector<16x32xf32>
    %cst_40 = arith.constant dense<0.000000e+00> : vector<16x4xf32>
    %144 = tpu.matmul %143, %7, %cst_40 {dimension_numbers = #tpu.dot_dimension_numbers<[1], [0], [0], [1], [0, 0, 1, 1], [], []>} : vector<16x32xf32>, vector<32x4xf32>, vector<16x4xf32> -> vector<16x4xf32>
    %cst_41 = arith.constant 0.353553385 : f32
    %145 = vector.broadcast %cst_41 : f32 to vector<16x4xf32>
    %146 = arith.mulf %144, %145 : vector<16x4xf32>
    %147 = vector.broadcast %13 : vector<16x1xf32> to vector<16x4xf32>
    %148 = arith.addf %146, %147 : vector<16x4xf32>
    %cst_42 = arith.constant dense<0.000000e+00> : vector<64x32xf32>
    %149 = tpu.matmul %1, %141, %cst_42 {dimension_numbers = #tpu.dot_dimension_numbers<[1], [0], [0], [1], [0, 0, 1, 1], [], []>} : vector<64x16xf32>, vector<16x32xf32>, vector<64x32xf32> -> vector<64x32xf32>
    %150 = arith.mulf %149, %3 : vector<64x32xf32>
    %151 = arith.truncf %140 : vector<16x32xf32> to vector<16x32xbf16>
    %152 = arith.truncf %150 : vector<64x32xf32> to vector<64x32xbf16>
    %cst_43 = arith.constant dense<0.000000e+00> : vector<16x64xf32>
    %153 = tpu.matmul %151, %152, %cst_43 {dimension_numbers = #tpu.dot_dimension_numbers<[1], [1], [0], [0], [0, 0, 1, 0], [], []>} : vector<16x32xbf16>, vector<64x32xbf16>, vector<16x64xf32> -> vector<16x64xf32>
    %cst_44 = arith.constant 0.353553385 : f32
    %154 = vector.broadcast %cst_44 : f32 to vector<16x64xf32>
    %155 = arith.mulf %153, %154 : vector<16x64xf32>
    %156 = arith.addf %155, %11 : vector<16x64xf32>
    %cst_45 = arith.constant dense<0xFF800000> : vector<16xf32>
    %157 = vector.multi_reduction <maximumf>, %156, %cst_45 [1] : vector<16x64xf32> to vector<16xf32>
    %158 = vector.shape_cast %157 : vector<16xf32> to vector<16x1xf32>
    %159 = vector.broadcast %158 : vector<16x1xf32> to vector<16x64xf32>
    %160 = arith.subf %156, %159 : vector<16x64xf32>
    %161 = math.exp %160 : vector<16x64xf32>
    %cst_46 = arith.constant dense<0.000000e+00> : vector<16x4xf32>
    %162 = tpu.matmul %161, %5, %cst_46 {dimension_numbers = #tpu.dot_dimension_numbers<[1], [0], [0], [1], [0, 0, 1, 1], [], []>} : vector<16x64xf32>, vector<64x4xf32>, vector<16x4xf32> -> vector<16x4xf32>
    %163 = vector.broadcast %158 : vector<16x1xf32> to vector<16x4xf32>
    %164 = arith.subf %148, %163 : vector<16x4xf32>
    %165 = math.exp %164 : vector<16x4xf32>
    %166 = tpu.reciprocal %162 {approx = true} : vector<16x4xf32> -> vector<16x4xf32>
    %167 = arith.mulf %165, %166 : vector<16x4xf32>
    %cst_47 = arith.constant dense<0.000000e+00> : vector<16x32xf32>
    %168 = tpu.matmul %167, %7, %cst_47 {dimension_numbers = #tpu.dot_dimension_numbers<[1], [1], [0], [0], [0, 0, 1, 0], [], []>} : vector<16x4xf32>, vector<32x4xf32>, vector<16x32xf32> -> vector<16x32xf32>
    %169 = arith.mulf %142, %168 : vector<16x32xf32>
    %170 = arith.truncf %169 : vector<16x32xf32> to vector<16x32xbf16>
    %cst_48 = arith.constant dense<0.000000e+00> : vector<16x32xf32>
    %171 = tpu.matmul %170, %127, %cst_48 {dimension_numbers = #tpu.dot_dimension_numbers<[1], [0], [0], [1], [0, 0, 1, 1], [], []>} : vector<16x32xbf16>, vector<32x32xbf16>, vector<16x32xf32> -> vector<16x32xf32>
    %172 = arith.addf %171, %123 : vector<16x32xf32>
    %cst_49 = arith.constant dense<0.000000e+00> : vector<16xf32>
    %173 = vector.multi_reduction <add>, %172, %cst_49 [1] : vector<16x32xf32> to vector<16xf32>
    %174 = vector.shape_cast %173 : vector<16xf32> to vector<16x1xf32>
    %cst_50 = arith.constant 3.200000e+01 : f32
    %175 = vector.broadcast %cst_50 : f32 to vector<16x1xf32>
    %176 = arith.divf %174, %175 : vector<16x1xf32>
    %177 = vector.broadcast %176 : vector<16x1xf32> to vector<16x32xf32>
    %178 = arith.subf %172, %177 : vector<16x32xf32>
    %179 = arith.mulf %178, %178 : vector<16x32xf32>
    %cst_51 = arith.constant dense<0.000000e+00> : vector<16xf32>
    %180 = vector.multi_reduction <add>, %179, %cst_51 [1] : vector<16x32xf32> to vector<16xf32>
    %181 = vector.shape_cast %180 : vector<16xf32> to vector<16x1xf32>
    %cst_52 = arith.constant 3.200000e+01 : f32
    %182 = vector.broadcast %cst_52 : f32 to vector<16x1xf32>
    %183 = arith.divf %181, %182 : vector<16x1xf32>
    %184 = vector.broadcast %176 : vector<16x1xf32> to vector<16x32xf32>
    %185 = arith.subf %172, %184 : vector<16x32xf32>
    %cst_53 = arith.constant 9.99999974E-6 : f32
    %186 = vector.broadcast %cst_53 : f32 to vector<16x1xf32>
    %187 = arith.addf %183, %186 : vector<16x1xf32>
    %188 = math.rsqrt %187 : vector<16x1xf32>
    %189 = vector.broadcast %188 : vector<16x1xf32> to vector<16x32xf32>
    %190 = arith.mulf %185, %189 : vector<16x32xf32>
    %191 = vector.broadcast %132 : vector<1x32xf32> to vector<16x32xf32>
    %192 = arith.mulf %190, %191 : vector<16x32xf32>
    %193 = vector.broadcast %133 : vector<1x32xf32> to vector<16x32xf32>
    %194 = arith.addf %192, %193 : vector<16x32xf32>
    %195 = arith.truncf %194 : vector<16x32xf32> to vector<16x32xbf16>
    %cst_54 = arith.constant dense<0.000000e+00> : vector<16x64xf32>
    %196 = tpu.matmul %195, %128, %cst_54 {dimension_numbers = #tpu.dot_dimension_numbers<[1], [0], [0], [1], [0, 0, 1, 1], [], []>} : vector<16x32xbf16>, vector<32x64xbf16>, vector<16x64xf32> -> vector<16x64xf32>
    %197 = vector.broadcast %136 : vector<1x64xf32> to vector<16x64xf32>
    %198 = arith.addf %196, %197 : vector<16x64xf32>
    %cst_55 = arith.constant 0.000000e+00 : f32
    %199 = vector.broadcast %cst_55 : f32 to vector<16x64xf32>
    %200 = arith.maximumf %198, %199 : vector<16x64xf32>
    %201 = arith.truncf %200 : vector<16x64xf32> to vector<16x64xbf16>
    %cst_56 = arith.constant dense<0.000000e+00> : vector<16x32xf32>
    %202 = tpu.matmul %201, %129, %cst_56 {dimension_numbers = #tpu.dot_dimension_numbers<[1], [1], [0], [0], [0, 0, 1, 0], [], []>} : vector<16x64xbf16>, vector<32x64xbf16>, vector<16x32xf32> -> vector<16x32xf32>
    %203 = vector.broadcast %137 : vector<1x32xf32> to vector<16x32xf32>
    %204 = arith.addf %202, %203 : vector<16x32xf32>
    %205 = arith.addf %204, %194 : vector<16x32xf32>
    %cst_57 = arith.constant dense<0.000000e+00> : vector<16xf32>
    %206 = vector.multi_reduction <add>, %205, %cst_57 [1] : vector<16x32xf32> to vector<16xf32>
    %207 = vector.shape_cast %206 : vector<16xf32> to vector<16x1xf32>
    %cst_58 = arith.constant 3.200000e+01 : f32
    %208 = vector.broadcast %cst_58 : f32 to vector<16x1xf32>
    %209 = arith.divf %207, %208 : vector<16x1xf32>
    %210 = vector.broadcast %209 : vector<16x1xf32> to vector<16x32xf32>
    %211 = arith.subf %205, %210 : vector<16x32xf32>
    %212 = arith.mulf %211, %211 : vector<16x32xf32>
    %cst_59 = arith.constant dense<0.000000e+00> : vector<16xf32>
    %213 = vector.multi_reduction <add>, %212, %cst_59 [1] : vector<16x32xf32> to vector<16xf32>
    %214 = vector.shape_cast %213 : vector<16xf32> to vector<16x1xf32>
    %cst_60 = arith.constant 3.200000e+01 : f32
    %215 = vector.broadcast %cst_60 : f32 to vector<16x1xf32>
    %216 = arith.divf %214, %215 : vector<16x1xf32>
    %217 = vector.broadcast %209 : vector<16x1xf32> to vector<16x32xf32>
    %218 = arith.subf %205, %217 : vector<16x32xf32>
    %cst_61 = arith.constant 9.99999974E-6 : f32
    %219 = vector.broadcast %cst_61 : f32 to vector<16x1xf32>
    %220 = arith.addf %216, %219 : vector<16x1xf32>
    %221 = math.rsqrt %220 : vector<16x1xf32>
    %222 = vector.broadcast %221 : vector<16x1xf32> to vector<16x32xf32>
    %223 = arith.mulf %218, %222 : vector<16x32xf32>
    %224 = vector.broadcast %134 : vector<1x32xf32> to vector<16x32xf32>
    %225 = arith.mulf %223, %224 : vector<16x32xf32>
    %226 = vector.broadcast %135 : vector<1x32xf32> to vector<16x32xf32>
    %227 = arith.addf %225, %226 : vector<16x32xf32>
    %228 = arith.mulf %227, %15 : vector<16x32xf32>
    %cst_62 = arith.constant dense<0.000000e+00> : vector<2x32xf32>
    %229 = tpu.matmul %9, %228, %cst_62 {dimension_numbers = #tpu.dot_dimension_numbers<[1], [0], [0], [1], [0, 0, 1, 1], [], []>} : vector<2x16xf32>, vector<16x32xf32>, vector<2x32xf32> -> vector<2x32xf32>
    %cst_63 = arith.constant dense<0.000000e+00> : vector<2xf32>
    %230 = vector.multi_reduction <add>, %229, %cst_63 [1] : vector<2x32xf32> to vector<2xf32>
    %231 = vector.shape_cast %230 : vector<2xf32> to vector<2x1xf32>
    %232 = vector.broadcast %17 : vector<1x1xf32> to vector<2x1xf32>
    %233 = arith.addf %231, %232 : vector<2x1xf32>
    %c0_64 = arith.constant 0 : index
    %c0_65 = arith.constant 0 : index
    %234 = vector.load %arg3[%c0_64, %c0_65] : memref<2x1xf32, #tpu.memory_space<vmem>>, vector<2x1xf32>
    tpu.vector_store %arg3[%c0_64, %c0_65], %233 {strides = array<i32>} : memref<2x1xf32, #tpu.memory_space<vmem>>, vector<2x1xf32>,
    return
  }
}

</mosaic_0001>

<llo_original>
// kernel: forward.1
$region0: #{forward.1}
  #allocation0 [shape = 'u32[]', space=smem, size = 0x4, offset = 0x4, fixed_abs, tag = 'smem constant byte address 0x4 - core index']
  #allocation1 [shape = 'u32[144,128]{1,0:T(1,128)}', space=vmem, size = 0x12000, scoped, tag = 'internal scratch']
  %s0 = inlined_call_operand.hbm [shape: f32[16,32], index: 0, kind: input, shape index: {}]
  %s1 = inlined_call_operand.hbm [shape: bf16[2,32,256], index: 1, kind: input, shape index: {}]
  %s2 = inlined_call_operand.hbm [shape: f32[296,128], index: 2, kind: input, shape index: {}]
  %s3 = inlined_call_operand.vmem [shape: f32[2,1], index: 3, kind: output, shape index: {}]
  %s4 = sld [smem:[#allocation0]]
  $region34: #{forward.1} parent=0
    _
  %s6 = ssub.s32 1, %s4
  %s7 = scalar_select 0, %s6, %s4
  $region1: #{forward.1} parent=0
    #allocation2 [shape = 'u8[8192]{0}', space=vmem, size = 0x2000, scoped, tag = 'input window, operand 0, single buffered']
    #allocation3 [shape = 's32[1]{0}', space=sflag, size = 0x4, scoped, tag = 'scoped memory for forward.1']
    #allocation4 [shape = 'u8[32768]{0}', space=vmem, size = 0x8000, scoped, tag = 'input window, operand 1, single buffered']
    #allocation5 [shape = 's32[1]{0}', space=sflag, size = 0x4, scoped, tag = 'scoped memory for forward.1']
    #allocation6 [shape = 'u8[151552]{0}', space=vmem, size = 0x25000, scoped, tag = 'input window, operand 2, single buffered']
    %8 = vsyncpa [#allocation3], 0
    %9 = vsyncpa [#allocation5], 0
    // Predicated region
    $region2: #{forward.1} parent=1 // pred_check
      _
    $region3: #{forward.1} parent=1 // pred_check_branch
      %11 = sbr.rel (0) target = $region5
    $region4: #{forward.1} parent=1 // pred_region
      %s13 = ssub.s32 256, 256
      %14 = vsyncadd [#allocation3], %s13
      %s15 = sshll.u32 [#allocation2], 4
      %s16 = int_to_ptr.vmem [resolvable:$true] %s15
      %21 = dma.hbm_to_vmem [thread:$0]  %s0, 256, %s16, [#allocation3], 128, 128, 8
    $region5: #{forward.1} parent=1 // pred_fallthru
      _
    // Predicated region
    $region6: #{forward.1} parent=1 // pred_check
      _
    $region7: #{forward.1} parent=1 // pred_check_branch
      %23 = sbr.rel (0) target = $region9
    $region8: #{forward.1} parent=1 // pred_region
      %s25 = ssub.s32 1024, 1024
      %26 = vsyncadd [#allocation5], %s25
      %s27 = sshll.u32 [#allocation4], 4
      %s28 = int_to_ptr.vmem [resolvable:$true] %s27
      %33 = dma.hbm_to_vmem [thread:$0]  %s1, 1024, %s28, [#allocation5], 128, 128, 8
    $region9: #{forward.1} parent=1 // pred_fallthru
      _
    // Predicated region
    $region10: #{forward.1} parent=1 // pred_check
      _
    $region11: #{forward.1} parent=1 // pred_check_branch
      %35 = sbr.rel (0) target = $region13
    $region12: #{forward.1} parent=1 // pred_region
      %s37 = ssub.s32 4736, 4736
      %38 = vsyncadd [#allocation5], %s37
      %s39 = sshll.u32 [#allocation6], 4
      %s40 = int_to_ptr.vmem [resolvable:$true] %s39
      %45 = dma.hbm_to_vmem [thread:$0]  %s2, 4736, %s40, [#allocation5], 128, 128, 8
    $region13: #{forward.1} parent=1 // pred_fallthru
      _
    // Predicated region
    $region14: #{forward.1} parent=1 // pred_check
      _
    $region15: #{forward.1} parent=1 // pred_check_branch
      %47 = sbr.rel (0) target = $region17
    $region16: #{forward.1} parent=1 // pred_region
      %48 = dma.done [#allocation3], 256
    $region17: #{forward.1} parent=1 // pred_fallthru
      _
    // Predicated region
    $region18: #{forward.1} parent=1 // pred_check
      _
    $region19: #{forward.1} parent=1 // pred_check_branch
      %50 = sbr.rel (0) target = $region21
    $region20: #{forward.1} parent=1 // pred_region
      %51 = dma.done [#allocation5], 1024
    $region21: #{forward.1} parent=1 // pred_fallthru
      _
    // Predicated region
    $region22: #{forward.1} parent=1 // pred_check
      _
    $region23: #{forward.1} parent=1 // pred_check_branch
      %53 = sbr.rel (0) target = $region25
    $region24: #{forward.1} parent=1 // pred_region
      %54 = dma.done [#allocation5], 4736
    $region25: #{forward.1} parent=1 // pred_fallthru
      _
    %v56 = vld [vmem:[#allocation6] sm:$0xff]
    %v57 = vld [vmem:[#allocation6 + $0x8] sm:$0xff]
    %v58 = vld [vmem:[#allocation6 + $0x10] sm:$0xff]
    %v59 = vld [vmem:[#allocation6 + $0x18] sm:$0xff]
    %v60 = vld [vmem:[#allocation6 + $0x20] sm:$0xff]
    %v61 = vld [vmem:[#allocation6 + $0x28] sm:$0xff]
    %v62 = vld [vmem:[#allocation6 + $0x30] sm:$0xff]
    %v63 = vld [vmem:[#allocation6 + $0x38] sm:$0xff]
    %v64 = vld [vmem:[#allocation6 + $0x40] sm:$0xff]
    %v65 = vld [vmem:[#allocation6 + $0x48] sm:$0xff]
    %v66 = vld [vmem:[#allocation6 + $0x50] sm:$0xff]
    %v67 = vld [vmem:[#allocation6 + $0x58] sm:$0xff]
    %v68 = vld [vmem:[#allocation6 + $0x60] sm:$0xff]
    %v69 = vld [vmem:[#allocation6 + $0x68] sm:$0xff]
    %v70 = vld [vmem:[#allocation6 + $0x70] sm:$0xff]
    %v71 = vld [vmem:[#allocation6 + $0x78] sm:$0xff]
    %v72 = vld [vmem:[#allocation6 + $0x80] sm:$0xff]
    %v73 = vld [vmem:[#allocation6 + $0x88] sm:$0xff]
    %v74 = vld [vmem:[#allocation6 + $0x90] sm:$0xff]
    %v75 = vld [vmem:[#allocation6 + $0x98] sm:$0xff]
    %v76 = vld [vmem:[#allocation6 + $0xa0] sm:$0xff]
    %v77 = vld [vmem:[#allocation6 + $0xa8] sm:$0xff]
    %v78 = vld [vmem:[#allocation6 + $0xb0] sm:$0xff]
    %v79 = vld [vmem:[#allocation6 + $0xb8] sm:$0xff]
    %v80 = vld [vmem:[#allocation6 + $0xc0] sm:$0xff]
    %v81 = vld [vmem:[#allocation6 + $0xc8] sm:$0xff]
    %v82 = vld [vmem:[#allocation6 + $0xd0] sm:$0xff]
    %v83 = vld [vmem:[#allocation6 + $0xd8] sm:$0xff]
    %v84 = vld [vmem:[#allocation6 + $0xe0] sm:$0x3]
    %v85 = vld [vmem:[#allocation6 + $0xe8] sm:$0xff]
    %v86 = vld [vmem:[#allocation6 + $0xf0] sm:$0xff]
    %v87 = vld [vmem:[#allocation6 + $0xf8] sm:$0xff]
    %v88 = vld [vmem:[#allocation6 + $0x100] sm:$0xff]
    %v89 = vld [vmem:[#allocation6 + $0x108] sm:$0xff]
    %v90 = vld [vmem:[#allocation6 + $0x110] sm:$0xff]
    %v91 = vld [vmem:[#allocation6 + $0x118] sm:$0x1]
    %v92 = vld [vmem:[#allocation6 + $0x120] sm:$0xf]
    %v93 = vld [vmem:[#allocation2] sm:$0xff]
    %v94 = vld [vmem:[#allocation2 + $0x8] sm:$0xff]
    %v95 = vld [vmem:[#allocation4] sm:$0xff]
    %v96 = vld [vmem:[#allocation4 + $0x8] sm:$0xff]
    %v97 = vld [vmem:[#allocation4 + $0x10] sm:$0xff]
    %v98 = vld [vmem:[#allocation4 + $0x18] sm:$0xff]
    %v99 = vpack.c.bf16 %v94, %v93
    %v104 = vunpack.c.l.b16 %v95
    %v105 = vunpack.c.l.b16 %v96
    %v106 = vunpack.c.l.b16 %v97
    %v107 = vunpack.c.l.b16 %v98
    %v108 = vpack.c.b16 %v105, %v104
    %v109 = vpack.c.b16 %v107, %v106
    %vm112 = vcmask 261120
    %v114 = vsel %vm112, %v99, 0
    %116 = vmatprep.subr.bf16.mxu0 0
    %117 = vmatpush1.bf16.msra.mxu0 %v108
    %118 = vmatprep.subr.bf16.mxu0 0
    %119 = vmatpush1.bf16.msra.mxu0 %v109
    %120 = vmatprep.subr.bf16.mxu0 0
    %121 = vmatpush1.bf16.msra.mxu0 0
    %122 = vmatprep.subr.bf16.mxu0 0
    %123 = vmatpush1.bf16.msra.mxu0 0
    %124 = vmatprep.subr.bf16.mxu0 0
    %125 = vmatpush1.bf16.msra.mxu0 0
    %126 = vmatprep.subr.bf16.mxu0 0
    %127 = vmatpush1.bf16.msra.mxu0 0
    %128 = vmatprep.subr.bf16.mxu0 0
    %129 = vmatpush1.bf16.msra.mxu0 0
    %130 = vmatprep.subr.bf16.mxu0 0
    %131 = vmatpush1.bf16.msra.mxu0 0
    %132 = vmatprep.subr.bf16.mxu0 0
    %133 = vmatpush1.bf16.msra.mxu0 0
    %134 = vmatprep.subr.bf16.mxu0 0
    %135 = vmatpush1.bf16.msra.mxu0 0
    %136 = vmatprep.subr.bf16.mxu0 0
    %137 = vmatpush1.bf16.msra.mxu0 0
    %138 = vmatprep.subr.bf16.mxu0 0
    %139 = vmatpush1.bf16.msra.mxu0 0
    %140 = vmatprep.subr.bf16.mxu0 0
    %141 = vmatpush1.bf16.msra.mxu0 0
    %142 = vmatprep.subr.bf16.mxu0 0
    %143 = vmatpush1.bf16.msra.mxu0 0
    %144 = vmatprep.subr.bf16.mxu0 0
    %145 = vmatpush1.bf16.msra.mxu0 0
    %146 = vmatprep.subr.bf16.mxu0 0
    %147 = vmatpush1.bf16.msra.mxu0 0
    %148 = vmatprep.mubr.bf16.mxu0 0
    %149 = vmatmul.mubr.bf16.gmra.mrb[0].mxu0 %v114
    %v150 = vpop.f32.mrb[0].mxu0
    %v151 = vadd.f32 0.0, %v150
    %v152 = vpop.f32.mrb[0].mxu0
    %v153 = vpop.f32.mrb[0].mxu0
    %v154 = vadd.f32 0.0, %v153
    %v155 = vpop.f32.mrb[0].mxu0
    %156 = vdwg.mxu0
    %159 = vrot.lane.b32.xlu0 %v151, 96
    %v160 = vpop.permute.xlu0 %159
    %161 = vrot.lane.b32.xlu0 %v154, 96
    %v162 = vpop.permute.xlu0 %161
    %v165 = vmul.f32 %v151, %v160
    %v166 = vmul.f32 %v154, %v162
    %v168 = vsel %vm112, %v165, 0
    %v171 = vsel %vm112, %v166, 0
    %173 = vmatprep.subr.mxu0 0.0
    %174 = vmatpush1.msra.mxu0 %v80
    %175 = vmatprep.subr.mxu0 0.0
    %176 = vmatpush1.msra.mxu0 %v81
    %177 = vmatprep.subr.mxu0 0.0
    %178 = vmatpush1.msra.mxu0 %v82
    %179 = vmatprep.subr.mxu0 0.0
    %180 = vmatpush1.msra.mxu0 %v83
    %181 = vmatprep.subr.mxu0 0.0
    %182 = vmatpush1.msra.mxu0 0.0
    %183 = vmatprep.subr.mxu0 0.0
    %184 = vmatpush1.msra.mxu0 0.0
    %185 = vmatprep.subr.mxu0 0.0
    %186 = vmatpush1.msra.mxu0 0.0
    %187 = vmatprep.subr.mxu0 0.0
    %188 = vmatpush1.msra.mxu0 0.0
    %189 = vmatprep.subr.mxu0 0.0
    %190 = vmatpush1.msra.mxu0 0.0
    %191 = vmatprep.subr.mxu0 0.0
    %192 = vmatpush1.msra.mxu0 0.0
    %193 = vmatprep.subr.mxu0 0.0
    %194 = vmatpush1.msra.mxu0 0.0
    %195 = vmatprep.subr.mxu0 0.0
    %196 = vmatpush1.msra.mxu0 0.0
    %197 = vmatprep.subr.mxu0 0.0
    %198 = vmatpush1.msra.mxu0 0.0
    %199 = vmatprep.subr.mxu0 0.0
    %200 = vmatpush1.msra.mxu0 0.0
    %201 = vmatprep.subr.mxu0 0.0
    %202 = vmatpush1.msra.mxu0 0.0
    %203 = vmatprep.subr.mxu0 0.0
    %204 = vmatpush1.msra.mxu0 0.0
    %205 = vmatprep.subr.mxu0 0.0
    %206 = vmatpush1.msra.mxu0 0.0
    %207 = vmatprep.subr.mxu0 0.0
    %208 = vmatpush1.msra.mxu0 0.0
    %209 = vmatprep.subr.mxu0 0.0
    %210 = vmatpush1.msra.mxu0 0.0
    %211 = vmatprep.subr.mxu0 0.0
    %212 = vmatpush1.msra.mxu0 0.0
    %213 = vmatprep.subr.mxu0 0.0
    %214 = vmatpush1.msra.mxu0 0.0
    %215 = vmatprep.subr.mxu0 0.0
    %216 = vmatpush1.msra.mxu0 0.0
    %217 = vmatprep.subr.mxu0 0.0
    %218 = vmatpush1.msra.mxu0 0.0
    %219 = vmatprep.subr.mxu0 0.0
    %220 = vmatpush1.msra.mxu0 0.0
    %221 = vmatprep.subr.mxu0 0.0
    %222 = vmatpush1.msra.mxu0 0.0
    %223 = vmatprep.subr.mxu0 0.0
    %224 = vmatpush1.msra.mxu0 0.0
    %225 = vmatprep.subr.mxu0 0.0
    %226 = vmatpush1.msra.mxu0 0.0
    %227 = vmatprep.subr.mxu0 0.0
    %228 = vmatpush1.msra.mxu0 0.0
    %229 = vmatprep.subr.mxu0 0.0
    %230 = vmatpush1.msra.mxu0 0.0
    %231 = vmatprep.subr.mxu0 0.0
    %232 = vmatpush1.msra.mxu0 0.0
    %233 = vmatprep.subr.mxu0 0.0
    %234 = vmatpush1.msra.mxu0 0.0
    %235 = vmatprep.subr.mxu0 0.0
    %236 = vmatpush1.msra.mxu0 0.0
    %237 = vmatprep.mubr.f32.mxu0 0.0
    %238 = vmatmul.mubr.f32.gmra.mrb[0].mxu0 %v168
    %v239 = vpop.f32.mrb[0].mxu0
    %v240 = vadd.f32 0.0, %v239
    %v241 = vpop.f32.mrb[0].mxu0
    %242 = vmatprep.mubr.f32.mxu0 0.0
    %243 = vmatmul.mubr.f32.gmra.mrb[0].mxu0 %v171
    %v244 = vpop.f32.mrb[0].mxu0
    %v245 = vadd.f32 0.0, %v244
    %v246 = vpop.f32.mrb[0].mxu0
    %247 = vdwg.mxu0
    %v248 = vmul.f32 %v240, 0.35355338
    %v249 = vmul.f32 %v245, 0.35355338
    %251 = vset.pattern.permute.xlu0 0
    %252 = vperm.xlu0 %251, %v87
    %v253 = vpop.permute.xlu0 %252
    %256 = vset.pattern.permute.xlu0 0
    %257 = vperm.xlu0 %256, %v88
    %v258 = vpop.permute.xlu0 %257
    %v260 = vadd.f32 %v248, %v253
    %v261 = vadd.f32 %v249, %v258
    %vm262 = vcmask 130048
    %v264 = vsel %vm262, %v56, 0
    %v267 = vsel %vm262, %v57, 0
    %v270 = vsel %vm262, %v58, 0
    %v273 = vsel %vm262, %v59, 0
    %v276 = vsel %vm262, %v60, 0
    %v279 = vsel %vm262, %v61, 0
    %v282 = vsel %vm262, %v62, 0
    %v285 = vsel %vm262, %v63, 0
    %287 = vmatprep.subr.mxu0 0.0
    %288 = vmatpush1.msra.mxu0 %v160
    %289 = vmatprep.subr.mxu0 0.0
    %290 = vmatpush1.msra.mxu0 %v162
    %291 = vmatprep.subr.mxu0 0.0
    %292 = vmatpush1.msra.mxu0 0.0
    %293 = vmatprep.subr.mxu0 0.0
    %294 = vmatpush1.msra.mxu0 0.0
    %295 = vmatprep.subr.mxu0 0.0
    %296 = vmatpush1.msra.mxu0 0.0
    %297 = vmatprep.subr.mxu0 0.0
    %298 = vmatpush1.msra.mxu0 0.0
    %299 = vmatprep.subr.mxu0 0.0
    %300 = vmatpush1.msra.mxu0 0.0
    %301 = vmatprep.subr.mxu0 0.0
    %302 = vmatpush1.msra.mxu0 0.0
    %303 = vmatprep.subr.mxu0 0.0
    %304 = vmatpush1.msra.mxu0 0.0
    %305 = vmatprep.subr.mxu0 0.0
    %306 = vmatpush1.msra.mxu0 0.0
    %307 = vmatprep.subr.mxu0 0.0
    %308 = vmatpush1.msra.mxu0 0.0
    %309 = vmatprep.subr.mxu0 0.0
    %310 = vmatpush1.msra.mxu0 0.0
    %311 = vmatprep.subr.mxu0 0.0
    %312 = vmatpush1.msra.mxu0 0.0
    %313 = vmatprep.subr.mxu0 0.0
    %314 = vmatpush1.msra.mxu0 0.0
    %315 = vmatprep.subr.mxu0 0.0
    %316 = vmatpush1.msra.mxu0 0.0
    %317 = vmatprep.subr.mxu0 0.0
    %318 = vmatpush1.msra.mxu0 0.0
    %319 = vmatprep.subr.mxu0 0.0
    %320 = vmatpush1.msra.mxu0 0.0
    %321 = vmatprep.subr.mxu0 0.0
    %322 = vmatpush1.msra.mxu0 0.0
    %323 = vmatprep.subr.mxu0 0.0
    %324 = vmatpush1.msra.mxu0 0.0
    %325 = vmatprep.subr.mxu0 0.0
    %326 = vmatpush1.msra.mxu0 0.0
    %327 = vmatprep.subr.mxu0 0.0
    %328 = vmatpush1.msra.mxu0 0.0
    %329 = vmatprep.subr.mxu0 0.0
    %330 = vmatpush1.msra.mxu0 0.0
    %331 = vmatprep.subr.mxu0 0.0
    %332 = vmatpush1.msra.mxu0 0.0
    %333 = vmatprep.subr.mxu0 0.0
    %334 = vmatpush1.msra.mxu0 0.0
    %335 = vmatprep.subr.mxu0 0.0
    %336 = vmatpush1.msra.mxu0 0.0
    %337 = vmatprep.subr.mxu0 0.0
    %338 = vmatpush1.msra.mxu0 0.0
    %339 = vmatprep.subr.mxu0 0.0
    %340 = vmatpush1.msra.mxu0 0.0
    %341 = vmatprep.subr.mxu0 0.0
    %342 = vmatpush1.msra.mxu0 0.0
    %343 = vmatprep.subr.mxu0 0.0
    %344 = vmatpush1.msra.mxu0 0.0
    %345 = vmatprep.subr.mxu0 0.0
    %346 = vmatpush1.msra.mxu0 0.0
    %347 = vmatprep.subr.mxu0 0.0
    %348 = vmatpush1.msra.mxu0 0.0
    %349 = vmatprep.subr.mxu0 0.0
    %350 = vmatpush1.msra.mxu0 0.0
    %351 = vmatprep.mubr.f32.mxu0 0.0
    %352 = vmatmul.mubr.f32.gmra.mrb[0].mxu0 %v264
    %v353 = vpop.f32.mrb[0].mxu0
    %v354 = vadd.f32 0.0, %v353
    %v355 = vpop.f32.mrb[0].mxu0
    %356 = vmatprep.mubr.f32.mxu0 0.0
    %357 = vmatmul.mubr.f32.gmra.mrb[0].mxu0 %v267
    %v358 = vpop.f32.mrb[0].mxu0
    %v359 = vadd.f32 0.0, %v358
    %v360 = vpop.f32.mrb[0].mxu0
    %361 = vmatprep.mubr.f32.mxu0 0.0
    %362 = vmatmul.mubr.f32.gmra.mrb[0].mxu0 %v270
    %v363 = vpop.f32.mrb[0].mxu0
    %v364 = vadd.f32 0.0, %v363
    %v365 = vpop.f32.mrb[0].mxu0
    %366 = vmatprep.mubr.f32.mxu0 0.0
    %367 = vmatmul.mubr.f32.gmra.mrb[0].mxu0 %v273
    %v368 = vpop.f32.mrb[0].mxu0
    %v369 = vadd.f32 0.0, %v368
    %v370 = vpop.f32.mrb[0].mxu0
    %371 = vmatprep.mubr.f32.mxu0 0.0
    %372 = vmatmul.mubr.f32.gmra.mrb[0].mxu0 %v276
    %v373 = vpop.f32.mrb[0].mxu0
    %v374 = vadd.f32 0.0, %v373
    %v375 = vpop.f32.mrb[0].mxu0
    %376 = vmatprep.mubr.f32.mxu0 0.0
    %377 = vmatmul.mubr.f32.gmra.mrb[0].mxu0 %v279
    %v378 = vpop.f32.mrb[0].mxu0
    %v379 = vadd.f32 0.0, %v378
    %v380 = vpop.f32.mrb[0].mxu0
    %381 = vmatprep.mubr.f32.mxu0 0.0
    %382 = vmatmul.mubr.f32.gmra.mrb[0].mxu0 %v282
    %v383 = vpop.f32.mrb[0].mxu0
    %v384 = vadd.f32 0.0, %v383
    %v385 = vpop.f32.mrb[0].mxu0
    %386 = vmatprep.mubr.f32.mxu0 0.0
    %387 = vmatmul.mubr.f32.gmra.mrb[0].mxu0 %v285
    %v388 = vpop.f32.mrb[0].mxu0
    %v389 = vadd.f32 0.0, %v388
    %v390 = vpop.f32.mrb[0].mxu0
    %391 = vdwg.mxu0
    %v392 = vmul.f32 %v354, %v64
    %v393 = vmul.f32 %v359, %v65
    %v394 = vmul.f32 %v364, %v66
    %v395 = vmul.f32 %v369, %v67
    %v396 = vmul.f32 %v374, %v68
    %v397 = vmul.f32 %v379, %v69
    %v398 = vmul.f32 %v384, %v70
    %v399 = vmul.f32 %v389, %v71
    %v400 = vpack.c.bf16 %v154, %v151
    %v401 = vpack.c.bf16 %v393, %v392
    %v402 = vpack.c.bf16 %v395, %v394
    %v403 = vpack.c.bf16 %v397, %v396
    %v404 = vpack.c.bf16 %v399, %v398
    %v406 = vsel %vm112, %v400, 0
    %v409 = vsel %vm112, %v401, 0
    %v412 = vsel %vm112, %v402, 0
    %v415 = vsel %vm112, %v403, 0
    %v418 = vsel %vm112, %v404, 0
    %420 = vmatprep.subr.bf16.mxu0 0
    %421 = vmatpush1.bf16.xpose.msra.mxu0 %v409
    %422 = vmatprep.subr.bf16.mxu0 0
    %423 = vmatpush1.bf16.xpose.msra.mxu0 %v412
    %424 = vmatprep.subr.bf16.mxu0 0
    %425 = vmatpush1.bf16.xpose.msra.mxu0 %v415
    %426 = vmatprep.subr.bf16.mxu0 0
    %427 = vmatpush1.bf16.xpose.msra.mxu0 %v418
    %428 = vmatprep.subr.bf16.mxu0 0
    %429 = vmatpush1.bf16.xpose.msra.mxu0 0
    %430 = vmatprep.subr.bf16.mxu0 0
    %431 = vmatpush1.bf16.xpose.msra.mxu0 0
    %432 = vmatprep.subr.bf16.mxu0 0
    %433 = vmatpush1.bf16.xpose.msra.mxu0 0
    %434 = vmatprep.subr.bf16.mxu0 0
    %435 = vmatpush1.bf16.xpose.msra.mxu0 0
    %436 = vmatprep.subr.bf16.mxu0 0
    %437 = vmatpush1.bf16.xpose.msra.mxu0 0
    %438 = vmatprep.subr.bf16.mxu0 0
    %439 = vmatpush1.bf16.xpose.msra.mxu0 0
    %440 = vmatprep.subr.bf16.mxu0 0
    %441 = vmatpush1.bf16.xpose.msra.mxu0 0
    %442 = vmatprep.subr.bf16.mxu0 0
    %443 = vmatpush1.bf16.xpose.msra.mxu0 0
    %444 = vmatprep.subr.bf16.mxu0 0
    %445 = vmatpush1.bf16.xpose.msra.mxu0 0
    %446 = vmatprep.subr.bf16.mxu0 0
    %447 = vmatpush1.bf16.xpose.msra.mxu0 0
    %448 = vmatprep.subr.bf16.mxu0 0
    %449 = vmatpush1.bf16.xpose.msra.mxu0 0
    %450 = vmatprep.subr.bf16.mxu0 0
    %451 = vmatpush1.bf16.xpose.msra.mxu0 0
    %452 = vmatprep.mubr.bf16.mxu0 0
    %453 = vmatmul.mubr.bf16.gmra.mrb[0].mxu0 %v406
    %v454 = vpop.f32.mrb[0].mxu0
    %v455 = vadd.f32 0.0, %v454
    %v456 = vpop.f32.mrb[0].mxu0
    %v457 = vpop.f32.mrb[0].mxu0
    %v458 = vadd.f32 0.0, %v457
    %v459 = vpop.f32.mrb[0].mxu0
    %460 = vdwg.mxu0
    %v461 = vmul.f32 %v455, 0.35355338
    %v462 = vmul.f32 %v458, 0.35355338
    %v463 = vadd.f32 %v461, %v85
    %v464 = vadd.f32 %v462, %v86
    %vm465 = vcmask 523264
    %v466 = vsel %vm465, %v463, -inf
    %467 = vmax.xlane.f32.xlu0 %v466
    %v468 = vpop.xlane.xlu0 %467
    %v469 = vsel %vm465, %v464, -inf
    %470 = vmax.xlane.f32.xlu0 %v469
    %v471 = vpop.xlane.xlu0 %470
    %v472 = vsub.f32 %v463, %v468
    %v473 = vsub.f32 %v464, %v471
    %v474 = vmul.f32 %v472, 1.442695
    %v475 = vpow.pop %v474
    %v476 = vmul.f32 %v473, 1.442695
    %v477 = vpow.pop %v476
    %v479 = vsel %vm465, %v475, 0
    %v482 = vsel %vm465, %v477, 0
    %484 = vmatprep.subr.mxu0 0.0
    %485 = vmatpush1.msra.mxu0 %v72
    %486 = vmatprep.subr.mxu0 0.0
    %487 = vmatpush1.msra.mxu0 %v73
    %488 = vmatprep.subr.mxu0 0.0
    %489 = vmatpush1.msra.mxu0 %v74
    %490 = vmatprep.subr.mxu0 0.0
    %491 = vmatpush1.msra.mxu0 %v75
    %492 = vmatprep.subr.mxu0 0.0
    %493 = vmatpush1.msra.mxu0 %v76
    %494 = vmatprep.subr.mxu0 0.0
    %495 = vmatpush1.msra.mxu0 %v77
    %496 = vmatprep.subr.mxu0 0.0
    %497 = vmatpush1.msra.mxu0 %v78
    %498 = vmatprep.subr.mxu0 0.0
    %499 = vmatpush1.msra.mxu0 %v79
    %500 = vmatprep.subr.mxu0 0.0
    %501 = vmatpush1.msra.mxu0 0.0
    %502 = vmatprep.subr.mxu0 0.0
    %503 = vmatpush1.msra.mxu0 0.0
    %504 = vmatprep.subr.mxu0 0.0
    %505 = vmatpush1.msra.mxu0 0.0
    %506 = vmatprep.subr.mxu0 0.0
    %507 = vmatpush1.msra.mxu0 0.0
    %508 = vmatprep.subr.mxu0 0.0
    %509 = vmatpush1.msra.mxu0 0.0
    %510 = vmatprep.subr.mxu0 0.0
    %511 = vmatpush1.msra.mxu0 0.0
    %512 = vmatprep.subr.mxu0 0.0
    %513 = vmatpush1.msra.mxu0 0.0
    %514 = vmatprep.subr.mxu0 0.0
    %515 = vmatpush1.msra.mxu0 0.0
    %516 = vmatprep.subr.mxu0 0.0
    %517 = vmatpush1.msra.mxu0 0.0
    %518 = vmatprep.subr.mxu0 0.0
    %519 = vmatpush1.msra.mxu0 0.0
    %520 = vmatprep.subr.mxu0 0.0
    %521 = vmatpush1.msra.mxu0 0.0
    %522 = vmatprep.subr.mxu0 0.0
    %523 = vmatpush1.msra.mxu0 0.0
    %524 = vmatprep.subr.mxu0 0.0
    %525 = vmatpush1.msra.mxu0 0.0
    %526 = vmatprep.subr.mxu0 0.0
    %527 = vmatpush1.msra.mxu0 0.0
    %528 = vmatprep.subr.mxu0 0.0
    %529 = vmatpush1.msra.mxu0 0.0
    %530 = vmatprep.subr.mxu0 0.0
    %531 = vmatpush1.msra.mxu0 0.0
    %532 = vmatprep.subr.mxu0 0.0
    %533 = vmatpush1.msra.mxu0 0.0
    %534 = vmatprep.subr.mxu0 0.0
    %535 = vmatpush1.msra.mxu0 0.0
    %536 = vmatprep.subr.mxu0 0.0
    %537 = vmatpush1.msra.mxu0 0.0
    %538 = vmatprep.subr.mxu0 0.0
    %539 = vmatpush1.msra.mxu0 0.0
    %540 = vmatprep.subr.mxu0 0.0
    %541 = vmatpush1.msra.mxu0 0.0
    %542 = vmatprep.subr.mxu0 0.0
    %543 = vmatpush1.msra.mxu0 0.0
    %544 = vmatprep.subr.mxu0 0.0
    %545 = vmatpush1.msra.mxu0 0.0
    %546 = vmatprep.subr.mxu0 0.0
    %547 = vmatpush1.msra.mxu0 0.0
    %548 = vmatprep.mubr.f32.mxu0 0.0
    %549 = vmatmul.mubr.f32.gmra.mrb[0].mxu0 %v479
    %v550 = vpop.f32.mrb[0].mxu0
    %v551 = vadd.f32 0.0, %v550
    %v552 = vpop.f32.mrb[0].mxu0
    %553 = vmatprep.mubr.f32.mxu0 0.0
    %554 = vmatmul.mubr.f32.gmra.mrb[0].mxu0 %v482
    %v555 = vpop.f32.mrb[0].mxu0
    %v556 = vadd.f32 0.0, %v555
    %v557 = vpop.f32.mrb[0].mxu0
    %558 = vdwg.mxu0
    %v559 = vsub.f32 %v260, %v468
    %v560 = vsub.f32 %v261, %v471
    %v561 = vmul.f32 %v559, 1.442695
    %v562 = vpow.pop %v561
    %v563 = vmul.f32 %v560, 1.442695
    %v564 = vpow.pop %v563
    %v565 = vrcp.pop %v551
    %v566 = vrcp.pop %v556
    %v567 = vmul.f32 %v562, %v565
    %v568 = vmul.f32 %v564, %v566
    %vm569 = vcmask 31744
    %v571 = vsel %vm569, %v567, 0
    %v574 = vsel %vm569, %v568, 0
    %v577 = vsel %vm569, %v80, 0
    %v580 = vsel %vm569, %v81, 0
    %v583 = vsel %vm569, %v82, 0
    %v586 = vsel %vm569, %v83, 0
    %588 = vmatprep.subr.mxu0 0.0
    %589 = vmatpush1.xpose.msra.mxu0 %v577
    %590 = vmatprep.subr.mxu0 0.0
    %591 = vmatpush1.xpose.msra.mxu0 %v580
    %592 = vmatprep.subr.mxu0 0.0
    %593 = vmatpush1.xpose.msra.mxu0 %v583
    %594 = vmatprep.subr.mxu0 0.0
    %595 = vmatpush1.xpose.msra.mxu0 %v586
    %596 = vmatprep.subr.mxu0 0.0
    %597 = vmatpush1.xpose.msra.mxu0 0.0
    %598 = vmatprep.subr.mxu0 0.0
    %599 = vmatpush1.xpose.msra.mxu0 0.0
    %600 = vmatprep.subr.mxu0 0.0
    %601 = vmatpush1.xpose.msra.mxu0 0.0
    %602 = vmatprep.subr.mxu0 0.0
    %603 = vmatpush1.xpose.msra.mxu0 0.0
    %604 = vmatprep.subr.mxu0 0.0
    %605 = vmatpush1.xpose.msra.mxu0 0.0
    %606 = vmatprep.subr.mxu0 0.0
    %607 = vmatpush1.xpose.msra.mxu0 0.0
    %608 = vmatprep.subr.mxu0 0.0
    %609 = vmatpush1.xpose.msra.mxu0 0.0
    %610 = vmatprep.subr.mxu0 0.0
    %611 = vmatpush1.xpose.msra.mxu0 0.0
    %612 = vmatprep.subr.mxu0 0.0
    %613 = vmatpush1.xpose.msra.mxu0 0.0
    %614 = vmatprep.subr.mxu0 0.0
    %615 = vmatpush1.xpose.msra.mxu0 0.0
    %616 = vmatprep.subr.mxu0 0.0
    %617 = vmatpush1.xpose.msra.mxu0 0.0
    %618 = vmatprep.subr.mxu0 0.0
    %619 = vmatpush1.xpose.msra.mxu0 0.0
    %620 = vmatprep.subr.mxu0 0.0
    %621 = vmatpush1.xpose.msra.mxu0 0.0
    %622 = vmatprep.subr.mxu0 0.0
    %623 = vmatpush1.xpose.msra.mxu0 0.0
    %624 = vmatprep.subr.mxu0 0.0
    %625 = vmatpush1.xpose.msra.mxu0 0.0
    %626 = vmatprep.subr.mxu0 0.0
    %627 = vmatpush1.xpose.msra.mxu0 0.0
    %628 = vmatprep.subr.mxu0 0.0
    %629 = vmatpush1.xpose.msra.mxu0 0.0
    %630 = vmatprep.subr.mxu0 0.0
    %631 = vmatpush1.xpose.msra.mxu0 0.0
    %632 = vmatprep.subr.mxu0 0.0
    %633 = vmatpush1.xpose.msra.mxu0 0.0
    %634 = vmatprep.subr.mxu0 0.0
    %635 = vmatpush1.xpose.msra.mxu0 0.0
    %636 = vmatprep.subr.mxu0 0.0
    %637 = vmatpush1.xpose.msra.mxu0 0.0
    %638 = vmatprep.subr.mxu0 0.0
    %639 = vmatpush1.xpose.msra.mxu0 0.0
    %640 = vmatprep.subr.mxu0 0.0
    %641 = vmatpush1.xpose.msra.mxu0 0.0
    %642 = vmatprep.subr.mxu0 0.0
    %643 = vmatpush1.xpose.msra.mxu0 0.0
    %644 = vmatprep.subr.mxu0 0.0
    %645 = vmatpush1.xpose.msra.mxu0 0.0
    %646 = vmatprep.subr.mxu0 0.0
    %647 = vmatpush1.xpose.msra.mxu0 0.0
    %648 = vmatprep.subr.mxu0 0.0
    %649 = vmatpush1.xpose.msra.mxu0 0.0
    %650 = vmatprep.subr.mxu0 0.0
    %651 = vmatpush1.xpose.msra.mxu0 0.0
    %652 = vmatprep.mubr.f32.mxu0 0.0
    %653 = vmatmul.mubr.f32.gmra.mrb[0].mxu0 %v571
    %v654 = vpop.f32.mrb[0].mxu0
    %v655 = vadd.f32 0.0, %v654
    %v656 = vpop.f32.mrb[0].mxu0
    %657 = vmatprep.mubr.f32.mxu0 0.0
    %658 = vmatmul.mubr.f32.gmra.mrb[0].mxu0 %v574
    %v659 = vpop.f32.mrb[0].mxu0
    %v660 = vadd.f32 0.0, %v659
    %v661 = vpop.f32.mrb[0].mxu0
    %662 = vdwg.mxu0
    %665 = vrot.lane.b32.xlu0 %v655, 64
    %v666 = vpop.permute.xlu0 %665
    %667 = vrot.lane.b32.xlu0 %v660, 64
    %v668 = vpop.permute.xlu0 %667
    %v671 = vmul.f32 %v151, %v666
    %v672 = vmul.f32 %v154, %v668
    %v673 = vpack.c.bf16 %v672, %v671
    %675 = vrot.lane.b32.xlu0 %v673, 64
    %v676 = vpop.permute.xlu0 %675
    %677 = vrot.lane.b32.xlu0 %v108, 32
    %v678 = vpop.permute.xlu0 %677
    %679 = vrot.lane.b32.xlu0 %v109, 32
    %v680 = vpop.permute.xlu0 %679
    %v684 = vsel %vm112, %v676, 0
    %686 = vmatprep.subr.bf16.mxu0 0
    %687 = vmatpush1.bf16.msra.mxu0 %v678
    %688 = vmatprep.subr.bf16.mxu0 0
    %689 = vmatpush1.bf16.msra.mxu0 %v680
    %690 = vmatprep.subr.bf16.mxu0 0
    %691 = vmatpush1.bf16.msra.mxu0 0
    %692 = vmatprep.subr.bf16.mxu0 0
    %693 = vmatpush1.bf16.msra.mxu0 0
    %694 = vmatprep.subr.bf16.mxu0 0
    %695 = vmatpush1.bf16.msra.mxu0 0
    %696 = vmatprep.subr.bf16.mxu0 0
    %697 = vmatpush1.bf16.msra.mxu0 0
    %698 = vmatprep.subr.bf16.mxu0 0
    %699 = vmatpush1.bf16.msra.mxu0 0
    %700 = vmatprep.subr.bf16.mxu0 0
    %701 = vmatpush1.bf16.msra.mxu0 0
    %702 = vmatprep.subr.bf16.mxu0 0
    %703 = vmatpush1.bf16.msra.mxu0 0
    %704 = vmatprep.subr.bf16.mxu0 0
    %705 = vmatpush1.bf16.msra.mxu0 0
    %706 = vmatprep.subr.bf16.mxu0 0
    %707 = vmatpush1.bf16.msra.mxu0 0
    %708 = vmatprep.subr.bf16.mxu0 0
    %709 = vmatpush1.bf16.msra.mxu0 0
    %710 = vmatprep.subr.bf16.mxu0 0
    %711 = vmatpush1.bf16.msra.mxu0 0
    %712 = vmatprep.subr.bf16.mxu0 0
    %713 = vmatpush1.bf16.msra.mxu0 0
    %714 = vmatprep.subr.bf16.mxu0 0
    %715 = vmatpush1.bf16.msra.mxu0 0
    %716 = vmatprep.subr.bf16.mxu0 0
    %717 = vmatpush1.bf16.msra.mxu0 0
    %718 = vmatprep.mubr.bf16.mxu0 0
    %719 = vmatmul.mubr.bf16.gmra.mrb[0].mxu0 %v684
    %v720 = vpop.f32.mrb[0].mxu0
    %v721 = vadd.f32 %v93, %v720
    %v722 = vpop.f32.mrb[0].mxu0
    %v723 = vpop.f32.mrb[0].mxu0
    %v724 = vadd.f32 %v94, %v723
    %v725 = vpop.f32.mrb[0].mxu0
    %726 = vdwg.mxu0
    %v727 = vsel %vm112, %v721, 0.0
    %728 = vadd.xlane.f32.xlu0 %v727
    %v729 = vpop.xlane.xlu0 %728
    %v730 = vsel %vm112, %v724, 0.0
    %731 = vadd.xlane.f32.xlu0 %v730
    %v732 = vpop.xlane.xlu0 %731
    %v733 = vrcp.pop 32.0
    %v734 = vmul.f32 %v729, %v733
    %v735 = vmul.f32 %v732, %v733
    %v736 = vsub.f32 %v721, %v734
    %v737 = vsub.f32 %v724, %v735
    %v738 = vmul.f32 %v736, %v736
    %v739 = vmul.f32 %v737, %v737
    %v740 = vsel %vm112, %v738, 0.0
    %741 = vadd.xlane.f32.xlu0 %v740
    %v742 = vpop.xlane.xlu0 %741
    %v743 = vsel %vm112, %v739, 0.0
    %744 = vadd.xlane.f32.xlu0 %v743
    %v745 = vpop.xlane.xlu0 %744
    %v746 = vmul.f32 %v742, %v733
    %v747 = vmul.f32 %v745, %v733
    %v748 = vadd.f32 %v746, 1e-05
    %v749 = vadd.f32 %v747, 1e-05
    %v750 = vrsqrt.pop %v748
    %v751 = vrsqrt.pop %v749
    %v752 = vmul.f32 %v736, %v750
    %v753 = vmul.f32 %v737, %v751
    %v754 = vlaneseq
    %v755 = vshrl.u32 %v754, 7
    %v756 = vsub.s32 0, %v755
    %v757 = vrot.slane %v92, %v756
    %v758 = vmul.f32 %v752, %v757
    %v759 = vmul.f32 %v753, %v757
    %761 = vrot.lane.b32.xlu0 %v757, 96
    %v762 = vpop.permute.xlu0 %761
    %v764 = vadd.f32 %v758, %v762
    %v765 = vadd.f32 %v759, %v762
    %v766 = vpack.c.bf16 %v765, %v764
    %v767 = vlaneseq
    %v768 = vshrl.u32 %v767, 7
    %v769 = vsub.s32 1, %v768
    %v770 = vrot.slane %v92, %v769
    %v771 = vunpack.c.h.b16 %v95
    %v772 = vunpack.c.h.b16 %v96
    %v773 = vunpack.c.h.b16 %v97
    %v774 = vunpack.c.h.b16 %v98
    %v775 = vpack.c.b16 %v772, %v771
    %v776 = vpack.c.b16 %v774, %v773
    %v780 = vsel %vm112, %v766, 0
    %782 = vmatprep.subr.bf16.mxu0 0
    %783 = vmatpush1.bf16.msra.mxu0 %v775
    %784 = vmatprep.subr.bf16.mxu0 0
    %785 = vmatpush1.bf16.msra.mxu0 %v776
    %786 = vmatprep.subr.bf16.mxu0 0
    %787 = vmatpush1.bf16.msra.mxu0 0
    %788 = vmatprep.subr.bf16.mxu0 0
    %789 = vmatpush1.bf16.msra.mxu0 0
    %790 = vmatprep.subr.bf16.mxu0 0
    %791 = vmatpush1.bf16.msra.mxu0 0
    %792 = vmatprep.subr.bf16.mxu0 0
    %793 = vmatpush1.bf16.msra.mxu0 0
    %794 = vmatprep.subr.bf16.mxu0 0
    %795 = vmatpush1.bf16.msra.mxu0 0
    %796 = vmatprep.subr.bf16.mxu0 0
    %797 = vmatpush1.bf16.msra.mxu0 0
    %798 = vmatprep.subr.bf16.mxu0 0
    %799 = vmatpush1.bf16.msra.mxu0 0
    %800 = vmatprep.subr.bf16.mxu0 0
    %801 = vmatpush1.bf16.msra.mxu0 0
    %802 = vmatprep.subr.bf16.mxu0 0
    %803 = vmatpush1.bf16.msra.mxu0 0
    %804 = vmatprep.subr.bf16.mxu0 0
    %805 = vmatpush1.bf16.msra.mxu0 0
    %806 = vmatprep.subr.bf16.mxu0 0
    %807 = vmatpush1.bf16.msra.mxu0 0
    %808 = vmatprep.subr.bf16.mxu0 0
    %809 = vmatpush1.bf16.msra.mxu0 0
    %810 = vmatprep.subr.bf16.mxu0 0
    %811 = vmatpush1.bf16.msra.mxu0 0
    %812 = vmatprep.subr.bf16.mxu0 0
    %813 = vmatpush1.bf16.msra.mxu0 0
    %814 = vmatprep.mubr.bf16.mxu0 0
    %815 = vmatmul.mubr.bf16.gmra.mrb[0].mxu0 %v780
    %v816 = vpop.f32.mrb[0].mxu0
    %v817 = vadd.f32 %v770, %v816
    %v818 = vpop.f32.mrb[0].mxu0
    %v819 = vpop.f32.mrb[0].mxu0
    %v820 = vadd.f32 %v770, %v819
    %v821 = vpop.f32.mrb[0].mxu0
    %822 = vdwg.mxu0
    %v823 = vmax.f32 %v817, 0.0
    %v824 = vmax.f32 %v820, 0.0
    %v825 = vpack.c.bf16 %v824, %v823
    %826 = vrot.lane.b32.xlu0 %v775, 64
    %v827 = vpop.permute.xlu0 %826
    %828 = vrot.lane.b32.xlu0 %v776, 64
    %v829 = vpop.permute.xlu0 %828
    %831 = vrot.lane.b32.xlu0 %v770, 64
    %v832 = vpop.permute.xlu0 %831
    %v835 = vsel %vm465, %v825, 0
    %v838 = vsel %vm465, %v827, 0
    %v841 = vsel %vm465, %v829, 0
    %843 = vmatprep.subr.bf16.mxu0 0
    %844 = vmatpush1.bf16.xpose.msra.mxu0 %v838
    %845 = vmatprep.subr.bf16.mxu0 0
    %846 = vmatpush1.bf16.xpose.msra.mxu0 %v841
    %847 = vmatprep.subr.bf16.mxu0 0
    %848 = vmatpush1.bf16.xpose.msra.mxu0 0
    %849 = vmatprep.subr.bf16.mxu0 0
    %850 = vmatpush1.bf16.xpose.msra.mxu0 0
    %851 = vmatprep.subr.bf16.mxu0 0
    %852 = vmatpush1.bf16.xpose.msra.mxu0 0
    %853 = vmatprep.subr.bf16.mxu0 0
    %854 = vmatpush1.bf16.xpose.msra.mxu0 0
    %855 = vmatprep.subr.bf16.mxu0 0
    %856 = vmatpush1.bf16.xpose.msra.mxu0 0
    %857 = vmatprep.subr.bf16.mxu0 0
    %858 = vmatpush1.bf16.xpose.msra.mxu0 0
    %859 = vmatprep.subr.bf16.mxu0 0
    %860 = vmatpush1.bf16.xpose.msra.mxu0 0
    %861 = vmatprep.subr.bf16.mxu0 0
    %862 = vmatpush1.bf16.xpose.msra.mxu0 0
    %863 = vmatprep.subr.bf16.mxu0 0
    %864 = vmatpush1.bf16.xpose.msra.mxu0 0
    %865 = vmatprep.subr.bf16.mxu0 0
    %866 = vmatpush1.bf16.xpose.msra.mxu0 0
    %867 = vmatprep.subr.bf16.mxu0 0
    %868 = vmatpush1.bf16.xpose.msra.mxu0 0
    %869 = vmatprep.subr.bf16.mxu0 0
    %870 = vmatpush1.bf16.xpose.msra.mxu0 0
    %871 = vmatprep.subr.bf16.mxu0 0
    %872 = vmatpush1.bf16.xpose.msra.mxu0 0
    %873 = vmatprep.subr.bf16.mxu0 0
    %874 = vmatpush1.bf16.xpose.msra.mxu0 0
    %875 = vmatprep.mubr.bf16.mxu0 0
    %876 = vmatmul.mubr.bf16.gmra.mrb[0].mxu0 %v835
    %v877 = vpop.f32.mrb[0].mxu0
    %v878 = vadd.f32 %v832, %v877
    %v879 = vpop.f32.mrb[0].mxu0
    %v880 = vpop.f32.mrb[0].mxu0
    %v881 = vadd.f32 %v832, %v880
    %v882 = vpop.f32.mrb[0].mxu0
    %883 = vdwg.mxu0
    %v884 = vadd.f32 %v878, %v764
    %v885 = vadd.f32 %v881, %v765
    %v886 = vsel %vm112, %v884, 0.0
    %887 = vadd.xlane.f32.xlu0 %v886
    %v888 = vpop.xlane.xlu0 %887
    %v889 = vsel %vm112, %v885, 0.0
    %890 = vadd.xlane.f32.xlu0 %v889
    %v891 = vpop.xlane.xlu0 %890
    %v892 = vmul.f32 %v888, %v733
    %v893 = vmul.f32 %v891, %v733
    %v894 = vsub.f32 %v884, %v892
    %v895 = vsub.f32 %v885, %v893
    %v896 = vmul.f32 %v894, %v894
    %v897 = vmul.f32 %v895, %v895
    %v898 = vsel %vm112, %v896, 0.0
    %899 = vadd.xlane.f32.xlu0 %v898
    %v900 = vpop.xlane.xlu0 %899
    %v901 = vsel %vm112, %v897, 0.0
    %902 = vadd.xlane.f32.xlu0 %v901
    %v903 = vpop.xlane.xlu0 %902
    %v904 = vmul.f32 %v900, %v733
    %v905 = vmul.f32 %v903, %v733
    %v906 = vadd.f32 %v904, 1e-05
    %v907 = vadd.f32 %v905, 1e-05
    %v908 = vrsqrt.pop %v906
    %v909 = vrsqrt.pop %v907
    %v910 = vmul.f32 %v894, %v908
    %v911 = vmul.f32 %v895, %v909
    %912 = vrot.lane.b32.xlu0 %v757, 64
    %v913 = vpop.permute.xlu0 %912
    %v915 = vmul.f32 %v910, %v913
    %v916 = vmul.f32 %v911, %v913
    %917 = vrot.lane.b32.xlu0 %v757, 32
    %v918 = vpop.permute.xlu0 %917
    %v920 = vadd.f32 %v915, %v918
    %v921 = vadd.f32 %v916, %v918
    %s922 = scalar_lea.vmem [#allocation4], 32
    %v923 = vld [vmem:[%s922] sm:$0xff]
    %v924 = vld [vmem:[%s922 + $0x8] sm:$0xff]
    %v925 = vld [vmem:[%s922 + $0x10] sm:$0xff]
    %v926 = vld [vmem:[%s922 + $0x18] sm:$0xff]
    %v927 = vpack.c.bf16 %v921, %v920
    %v932 = vunpack.c.l.b16 %v923
    %v933 = vunpack.c.l.b16 %v924
    %v934 = vunpack.c.l.b16 %v925
    %v935 = vunpack.c.l.b16 %v926
    %v936 = vpack.c.b16 %v933, %v932
    %v937 = vpack.c.b16 %v935, %v934
    %v941 = vsel %vm112, %v927, 0
    %943 = vmatprep.subr.bf16.mxu0 0
    %944 = vmatpush1.bf16.msra.mxu0 %v936
    %945 = vmatprep.subr.bf16.mxu0 0
    %946 = vmatpush1.bf16.msra.mxu0 %v937
    %947 = vmatprep.subr.bf16.mxu0 0
    %948 = vmatpush1.bf16.msra.mxu0 0
    %949 = vmatprep.subr.bf16.mxu0 0
    %950 = vmatpush1.bf16.msra.mxu0 0
    %951 = vmatprep.subr.bf16.mxu0 0
    %952 = vmatpush1.bf16.msra.mxu0 0
    %953 = vmatprep.subr.bf16.mxu0 0
    %954 = vmatpush1.bf16.msra.mxu0 0
    %955 = vmatprep.subr.bf16.mxu0 0
    %956 = vmatpush1.bf16.msra.mxu0 0
    %957 = vmatprep.subr.bf16.mxu0 0
    %958 = vmatpush1.bf16.msra.mxu0 0
    %959 = vmatprep.subr.bf16.mxu0 0
    %960 = vmatpush1.bf16.msra.mxu0 0
    %961 = vmatprep.subr.bf16.mxu0 0
    %962 = vmatpush1.bf16.msra.mxu0 0
    %963 = vmatprep.subr.bf16.mxu0 0
    %964 = vmatpush1.bf16.msra.mxu0 0
    %965 = vmatprep.subr.bf16.mxu0 0
    %966 = vmatpush1.bf16.msra.mxu0 0
    %967 = vmatprep.subr.bf16.mxu0 0
    %968 = vmatpush1.bf16.msra.mxu0 0
    %969 = vmatprep.subr.bf16.mxu0 0
    %970 = vmatpush1.bf16.msra.mxu0 0
    %971 = vmatprep.subr.bf16.mxu0 0
    %972 = vmatpush1.bf16.msra.mxu0 0
    %973 = vmatprep.subr.bf16.mxu0 0
    %974 = vmatpush1.bf16.msra.mxu0 0
    %975 = vmatprep.mubr.bf16.mxu0 0
    %976 = vmatmul.mubr.bf16.gmra.mrb[0].mxu0 %v941
    %v977 = vpop.f32.mrb[0].mxu0
    %v978 = vadd.f32 0.0, %v977
    %v979 = vpop.f32.mrb[0].mxu0
    %v980 = vpop.f32.mrb[0].mxu0
    %v981 = vadd.f32 0.0, %v980
    %v982 = vpop.f32.mrb[0].mxu0
    %983 = vdwg.mxu0
    %986 = vrot.lane.b32.xlu0 %v978, 96
    %v987 = vpop.permute.xlu0 %986
    %988 = vrot.lane.b32.xlu0 %v981, 96
    %v989 = vpop.permute.xlu0 %988
    %v992 = vmul.f32 %v978, %v987
    %v993 = vmul.f32 %v981, %v989
    %v995 = vsel %vm112, %v992, 0
    %v998 = vsel %vm112, %v993, 0
    %1000 = vmatprep.subr.mxu0 0.0
    %1001 = vmatpush1.msra.mxu0 %v80
    %1002 = vmatprep.subr.mxu0 0.0
    %1003 = vmatpush1.msra.mxu0 %v81
    %1004 = vmatprep.subr.mxu0 0.0
    %1005 = vmatpush1.msra.mxu0 %v82
    %1006 = vmatprep.subr.mxu0 0.0
    %1007 = vmatpush1.msra.mxu0 %v83
    %1008 = vmatprep.subr.mxu0 0.0
    %1009 = vmatpush1.msra.mxu0 0.0
    %1010 = vmatprep.subr.mxu0 0.0
    %1011 = vmatpush1.msra.mxu0 0.0
    %1012 = vmatprep.subr.mxu0 0.0
    %1013 = vmatpush1.msra.mxu0 0.0
    %1014 = vmatprep.subr.mxu0 0.0
    %1015 = vmatpush1.msra.mxu0 0.0
    %1016 = vmatprep.subr.mxu0 0.0
    %1017 = vmatpush1.msra.mxu0 0.0
    %1018 = vmatprep.subr.mxu0 0.0
    %1019 = vmatpush1.msra.mxu0 0.0
    %1020 = vmatprep.subr.mxu0 0.0
    %1021 = vmatpush1.msra.mxu0 0.0
    %1022 = vmatprep.subr.mxu0 0.0
    %1023 = vmatpush1.msra.mxu0 0.0
    %1024 = vmatprep.subr.mxu0 0.0
    %1025 = vmatpush1.msra.mxu0 0.0
    %1026 = vmatprep.subr.mxu0 0.0
    %1027 = vmatpush1.msra.mxu0 0.0
    %1028 = vmatprep.subr.mxu0 0.0
    %1029 = vmatpush1.msra.mxu0 0.0
    %1030 = vmatprep.subr.mxu0 0.0
    %1031 = vmatpush1.msra.mxu0 0.0
    %1032 = vmatprep.subr.mxu0 0.0
    %1033 = vmatpush1.msra.mxu0 0.0
    %1034 = vmatprep.subr.mxu0 0.0
    %1035 = vmatpush1.msra.mxu0 0.0
    %1036 = vmatprep.subr.mxu0 0.0
    %1037 = vmatpush1.msra.mxu0 0.0
    %1038 = vmatprep.subr.mxu0 0.0
    %1039 = vmatpush1.msra.mxu0 0.0
    %1040 = vmatprep.subr.mxu0 0.0
    %1041 = vmatpush1.msra.mxu0 0.0
    %1042 = vmatprep.subr.mxu0 0.0
    %1043 = vmatpush1.msra.mxu0 0.0
    %1044 = vmatprep.subr.mxu0 0.0
    %1045 = vmatpush1.msra.mxu0 0.0
    %1046 = vmatprep.subr.mxu0 0.0
    %1047 = vmatpush1.msra.mxu0 0.0
    %1048 = vmatprep.subr.mxu0 0.0
    %1049 = vmatpush1.msra.mxu0 0.0
    %1050 = vmatprep.subr.mxu0 0.0
    %1051 = vmatpush1.msra.mxu0 0.0
    %1052 = vmatprep.subr.mxu0 0.0
    %1053 = vmatpush1.msra.mxu0 0.0
    %1054 = vmatprep.subr.mxu0 0.0
    %1055 = vmatpush1.msra.mxu0 0.0
    %1056 = vmatprep.subr.mxu0 0.0
    %1057 = vmatpush1.msra.mxu0 0.0
    %1058 = vmatprep.subr.mxu0 0.0
    %1059 = vmatpush1.msra.mxu0 0.0
    %1060 = vmatprep.subr.mxu0 0.0
    %1061 = vmatpush1.msra.mxu0 0.0
    %1062 = vmatprep.subr.mxu0 0.0
    %1063 = vmatpush1.msra.mxu0 0.0
    %1064 = vmatprep.mubr.f32.mxu0 0.0
    %1065 = vmatmul.mubr.f32.gmra.mrb[0].mxu0 %v995
    %v1066 = vpop.f32.mrb[0].mxu0
    %v1067 = vadd.f32 0.0, %v1066
    %v1068 = vpop.f32.mrb[0].mxu0
    %1069 = vmatprep.mubr.f32.mxu0 0.0
    %1070 = vmatmul.mubr.f32.gmra.mrb[0].mxu0 %v998
    %v1071 = vpop.f32.mrb[0].mxu0
    %v1072 = vadd.f32 0.0, %v1071
    %v1073 = vpop.f32.mrb[0].mxu0
    %1074 = vdwg.mxu0
    %v1075 = vmul.f32 %v1067, 0.35355338
    %v1076 = vmul.f32 %v1072, 0.35355338
    %v1077 = vadd.f32 %v1075, %v253
    %v1078 = vadd.f32 %v1076, %v258
    %1079 = vmatprep.subr.mxu0 0.0
    %1080 = vmatpush1.msra.mxu0 %v987
    %1081 = vmatprep.subr.mxu0 0.0
    %1082 = vmatpush1.msra.mxu0 %v989
    %1083 = vmatprep.subr.mxu0 0.0
    %1084 = vmatpush1.msra.mxu0 0.0
    %1085 = vmatprep.subr.mxu0 0.0
    %1086 = vmatpush1.msra.mxu0 0.0
    %1087 = vmatprep.subr.mxu0 0.0
    %1088 = vmatpush1.msra.mxu0 0.0
    %1089 = vmatprep.subr.mxu0 0.0
    %1090 = vmatpush1.msra.mxu0 0.0
    %1091 = vmatprep.subr.mxu0 0.0
    %1092 = vmatpush1.msra.mxu0 0.0
    %1093 = vmatprep.subr.mxu0 0.0
    %1094 = vmatpush1.msra.mxu0 0.0
    %1095 = vmatprep.subr.mxu0 0.0
    %1096 = vmatpush1.msra.mxu0 0.0
    %1097 = vmatprep.subr.mxu0 0.0
    %1098 = vmatpush1.msra.mxu0 0.0
    %1099 = vmatprep.subr.mxu0 0.0
    %1100 = vmatpush1.msra.mxu0 0.0
    %1101 = vmatprep.subr.mxu0 0.0
    %1102 = vmatpush1.msra.mxu0 0.0
    %1103 = vmatprep.subr.mxu0 0.0
    %1104 = vmatpush1.msra.mxu0 0.0
    %1105 = vmatprep.subr.mxu0 0.0
    %1106 = vmatpush1.msra.mxu0 0.0
    %1107 = vmatprep.subr.mxu0 0.0
    %1108 = vmatpush1.msra.mxu0 0.0
    %1109 = vmatprep.subr.mxu0 0.0
    %1110 = vmatpush1.msra.mxu0 0.0
    %1111 = vmatprep.subr.mxu0 0.0
    %1112 = vmatpush1.msra.mxu0 0.0
    %1113 = vmatprep.subr.mxu0 0.0
    %1114 = vmatpush1.msra.mxu0 0.0
    %1115 = vmatprep.subr.mxu0 0.0
    %1116 = vmatpush1.msra.mxu0 0.0
    %1117 = vmatprep.subr.mxu0 0.0
    %1118 = vmatpush1.msra.mxu0 0.0
    %1119 = vmatprep.subr.mxu0 0.0
    %1120 = vmatpush1.msra.mxu0 0.0
    %1121 = vmatprep.subr.mxu0 0.0
    %1122 = vmatpush1.msra.mxu0 0.0
    %1123 = vmatprep.subr.mxu0 0.0
    %1124 = vmatpush1.msra.mxu0 0.0
    %1125 = vmatprep.subr.mxu0 0.0
    %1126 = vmatpush1.msra.mxu0 0.0
    %1127 = vmatprep.subr.mxu0 0.0
    %1128 = vmatpush1.msra.mxu0 0.0
    %1129 = vmatprep.subr.mxu0 0.0
    %1130 = vmatpush1.msra.mxu0 0.0
    %1131 = vmatprep.subr.mxu0 0.0
    %1132 = vmatpush1.msra.mxu0 0.0
    %1133 = vmatprep.subr.mxu0 0.0
    %1134 = vmatpush1.msra.mxu0 0.0
    %1135 = vmatprep.subr.mxu0 0.0
    %1136 = vmatpush1.msra.mxu0 0.0
    %1137 = vmatprep.subr.mxu0 0.0
    %1138 = vmatpush1.msra.mxu0 0.0
    %1139 = vmatprep.subr.mxu0 0.0
    %1140 = vmatpush1.msra.mxu0 0.0
    %1141 = vmatprep.subr.mxu0 0.0
    %1142 = vmatpush1.msra.mxu0 0.0
    %1143 = vmatprep.mubr.f32.mxu0 0.0
    %1144 = vmatmul.mubr.f32.gmra.mrb[0].mxu0 %v264
    %v1145 = vpop.f32.mrb[0].mxu0
    %v1146 = vadd.f32 0.0, %v1145
    %v1147 = vpop.f32.mrb[0].mxu0
    %1148 = vmatprep.mubr.f32.mxu0 0.0
    %1149 = vmatmul.mubr.f32.gmra.mrb[0].mxu0 %v267
    %v1150 = vpop.f32.mrb[0].mxu0
    %v1151 = vadd.f32 0.0, %v1150
    %v1152 = vpop.f32.mrb[0].mxu0
    %1153 = vmatprep.mubr.f32.mxu0 0.0
    %1154 = vmatmul.mubr.f32.gmra.mrb[0].mxu0 %v270
    %v1155 = vpop.f32.mrb[0].mxu0
    %v1156 = vadd.f32 0.0, %v1155
    %v1157 = vpop.f32.mrb[0].mxu0
    %1158 = vmatprep.mubr.f32.mxu0 0.0
    %1159 = vmatmul.mubr.f32.gmra.mrb[0].mxu0 %v273
    %v1160 = vpop.f32.mrb[0].mxu0
    %v1161 = vadd.f32 0.0, %v1160
    %v1162 = vpop.f32.mrb[0].mxu0
    %1163 = vmatprep.mubr.f32.mxu0 0.0
    %1164 = vmatmul.mubr.f32.gmra.mrb[0].mxu0 %v276
    %v1165 = vpop.f32.mrb[0].mxu0
    %v1166 = vadd.f32 0.0, %v1165
    %v1167 = vpop.f32.mrb[0].mxu0
    %1168 = vmatprep.mubr.f32.mxu0 0.0
    %1169 = vmatmul.mubr.f32.gmra.mrb[0].mxu0 %v279
    %v1170 = vpop.f32.mrb[0].mxu0
    %v1171 = vadd.f32 0.0, %v1170
    %v1172 = vpop.f32.mrb[0].mxu0
    %1173 = vmatprep.mubr.f32.mxu0 0.0
    %1174 = vmatmul.mubr.f32.gmra.mrb[0].mxu0 %v282
    %v1175 = vpop.f32.mrb[0].mxu0
    %v1176 = vadd.f32 0.0, %v1175
    %v1177 = vpop.f32.mrb[0].mxu0
    %1178 = vmatprep.mubr.f32.mxu0 0.0
    %1179 = vmatmul.mubr.f32.gmra.mrb[0].mxu0 %v285
    %v1180 = vpop.f32.mrb[0].mxu0
    %v1181 = vadd.f32 0.0, %v1180
    %v1182 = vpop.f32.mrb[0].mxu0
    %1183 = vdwg.mxu0
    %v1184 = vmul.f32 %v1146, %v64
    %v1185 = vmul.f32 %v1151, %v65
    %v1186 = vmul.f32 %v1156, %v66
    %v1187 = vmul.f32 %v1161, %v67
    %v1188 = vmul.f32 %v1166, %v68
    %v1189 = vmul.f32 %v1171, %v69
    %v1190 = vmul.f32 %v1176, %v70
    %v1191 = vmul.f32 %v1181, %v71
    %v1192 = vpack.c.bf16 %v981, %v978
    %v1193 = vpack.c.bf16 %v1185, %v1184
    %v1194 = vpack.c.bf16 %v1187, %v1186
    %v1195 = vpack.c.bf16 %v1189, %v1188
    %v1196 = vpack.c.bf16 %v1191, %v1190
    %v1198 = vsel %vm112, %v1192, 0
    %v1201 = vsel %vm112, %v1193, 0
    %v1204 = vsel %vm112, %v1194, 0
    %v1207 = vsel %vm112, %v1195, 0
    %v1210 = vsel %vm112, %v1196, 0
    %1212 = vmatprep.subr.bf16.mxu0 0
    %1213 = vmatpush1.bf16.xpose.msra.mxu0 %v1201
    %1214 = vmatprep.subr.bf16.mxu0 0
    %1215 = vmatpush1.bf16.xpose.msra.mxu0 %v1204
    %1216 = vmatprep.subr.bf16.mxu0 0
    %1217 = vmatpush1.bf16.xpose.msra.mxu0 %v1207
    %1218 = vmatprep.subr.bf16.mxu0 0
    %1219 = vmatpush1.bf16.xpose.msra.mxu0 %v1210
    %1220 = vmatprep.subr.bf16.mxu0 0
    %1221 = vmatpush1.bf16.xpose.msra.mxu0 0
    %1222 = vmatprep.subr.bf16.mxu0 0
    %1223 = vmatpush1.bf16.xpose.msra.mxu0 0
    %1224 = vmatprep.subr.bf16.mxu0 0
    %1225 = vmatpush1.bf16.xpose.msra.mxu0 0
    %1226 = vmatprep.subr.bf16.mxu0 0
    %1227 = vmatpush1.bf16.xpose.msra.mxu0 0
    %1228 = vmatprep.subr.bf16.mxu0 0
    %1229 = vmatpush1.bf16.xpose.msra.mxu0 0
    %1230 = vmatprep.subr.bf16.mxu0 0
    %1231 = vmatpush1.bf16.xpose.msra.mxu0 0
    %1232 = vmatprep.subr.bf16.mxu0 0
    %1233 = vmatpush1.bf16.xpose.msra.mxu0 0
    %1234 = vmatprep.subr.bf16.mxu0 0
    %1235 = vmatpush1.bf16.xpose.msra.mxu0 0
    %1236 = vmatprep.subr.bf16.mxu0 0
    %1237 = vmatpush1.bf16.xpose.msra.mxu0 0
    %1238 = vmatprep.subr.bf16.mxu0 0
    %1239 = vmatpush1.bf16.xpose.msra.mxu0 0
    %1240 = vmatprep.subr.bf16.mxu0 0
    %1241 = vmatpush1.bf16.xpose.msra.mxu0 0
    %1242 = vmatprep.subr.bf16.mxu0 0
    %1243 = vmatpush1.bf16.xpose.msra.mxu0 0
    %1244 = vmatprep.mubr.bf16.mxu0 0
    %1245 = vmatmul.mubr.bf16.gmra.mrb[0].mxu0 %v1198
    %v1246 = vpop.f32.mrb[0].mxu0
    %v1247 = vadd.f32 0.0, %v1246
    %v1248 = vpop.f32.mrb[0].mxu0
    %v1249 = vpop.f32.mrb[0].mxu0
    %v1250 = vadd.f32 0.0, %v1249
    %v1251 = vpop.f32.mrb[0].mxu0
    %1252 = vdwg.mxu0
    %v1253 = vmul.f32 %v1247, 0.35355338
    %v1254 = vmul.f32 %v1250, 0.35355338
    %v1255 = vadd.f32 %v1253, %v85
    %v1256 = vadd.f32 %v1254, %v86
    %v1257 = vsel %vm465, %v1255, -inf
    %1258 = vmax.xlane.f32.xlu0 %v1257
    %v1259 = vpop.xlane.xlu0 %1258
    %v1260 = vsel %vm465, %v1256, -inf
    %1261 = vmax.xlane.f32.xlu0 %v1260
    %v1262 = vpop.xlane.xlu0 %1261
    %v1263 = vsub.f32 %v1255, %v1259
    %v1264 = vsub.f32 %v1256, %v1262
    %v1265 = vmul.f32 %v1263, 1.442695
    %v1266 = vpow.pop %v1265
    %v1267 = vmul.f32 %v1264, 1.442695
    %v1268 = vpow.pop %v1267
    %v1270 = vsel %vm465, %v1266, 0
    %v1273 = vsel %vm465, %v1268, 0
    %1275 = vmatprep.subr.mxu0 0.0
    %1276 = vmatpush1.msra.mxu0 %v72
    %1277 = vmatprep.subr.mxu0 0.0
    %1278 = vmatpush1.msra.mxu0 %v73
    %1279 = vmatprep.subr.mxu0 0.0
    %1280 = vmatpush1.msra.mxu0 %v74
    %1281 = vmatprep.subr.mxu0 0.0
    %1282 = vmatpush1.msra.mxu0 %v75
    %1283 = vmatprep.subr.mxu0 0.0
    %1284 = vmatpush1.msra.mxu0 %v76
    %1285 = vmatprep.subr.mxu0 0.0
    %1286 = vmatpush1.msra.mxu0 %v77
    %1287 = vmatprep.subr.mxu0 0.0
    %1288 = vmatpush1.msra.mxu0 %v78
    %1289 = vmatprep.subr.mxu0 0.0
    %1290 = vmatpush1.msra.mxu0 %v79
    %1291 = vmatprep.subr.mxu0 0.0
    %1292 = vmatpush1.msra.mxu0 0.0
    %1293 = vmatprep.subr.mxu0 0.0
    %1294 = vmatpush1.msra.mxu0 0.0
    %1295 = vmatprep.subr.mxu0 0.0
    %1296 = vmatpush1.msra.mxu0 0.0
    %1297 = vmatprep.subr.mxu0 0.0
    %1298 = vmatpush1.msra.mxu0 0.0
    %1299 = vmatprep.subr.mxu0 0.0
    %1300 = vmatpush1.msra.mxu0 0.0
    %1301 = vmatprep.subr.mxu0 0.0
    %1302 = vmatpush1.msra.mxu0 0.0
    %1303 = vmatprep.subr.mxu0 0.0
    %1304 = vmatpush1.msra.mxu0 0.0
    %1305 = vmatprep.subr.mxu0 0.0
    %1306 = vmatpush1.msra.mxu0 0.0
    %1307 = vmatprep.subr.mxu0 0.0
    %1308 = vmatpush1.msra.mxu0 0.0
    %1309 = vmatprep.subr.mxu0 0.0
    %1310 = vmatpush1.msra.mxu0 0.0
    %1311 = vmatprep.subr.mxu0 0.0
    %1312 = vmatpush1.msra.mxu0 0.0
    %1313 = vmatprep.subr.mxu0 0.0
    %1314 = vmatpush1.msra.mxu0 0.0
    %1315 = vmatprep.subr.mxu0 0.0
    %1316 = vmatpush1.msra.mxu0 0.0
    %1317 = vmatprep.subr.mxu0 0.0
    %1318 = vmatpush1.msra.mxu0 0.0
    %1319 = vmatprep.subr.mxu0 0.0
    %1320 = vmatpush1.msra.mxu0 0.0
    %1321 = vmatprep.subr.mxu0 0.0
    %1322 = vmatpush1.msra.mxu0 0.0
    %1323 = vmatprep.subr.mxu0 0.0
    %1324 = vmatpush1.msra.mxu0 0.0
    %1325 = vmatprep.subr.mxu0 0.0
    %1326 = vmatpush1.msra.mxu0 0.0
    %1327 = vmatprep.subr.mxu0 0.0
    %1328 = vmatpush1.msra.mxu0 0.0
    %1329 = vmatprep.subr.mxu0 0.0
    %1330 = vmatpush1.msra.mxu0 0.0
    %1331 = vmatprep.subr.mxu0 0.0
    %1332 = vmatpush1.msra.mxu0 0.0
    %1333 = vmatprep.subr.mxu0 0.0
    %1334 = vmatpush1.msra.mxu0 0.0
    %1335 = vmatprep.subr.mxu0 0.0
    %1336 = vmatpush1.msra.mxu0 0.0
    %1337 = vmatprep.subr.mxu0 0.0
    %1338 = vmatpush1.msra.mxu0 0.0
    %1339 = vmatprep.mubr.f32.mxu0 0.0
    %1340 = vmatmul.mubr.f32.gmra.mrb[0].mxu0 %v1270
    %v1341 = vpop.f32.mrb[0].mxu0
    %v1342 = vadd.f32 0.0, %v1341
    %v1343 = vpop.f32.mrb[0].mxu0
    %1344 = vmatprep.mubr.f32.mxu0 0.0
    %1345 = vmatmul.mubr.f32.gmra.mrb[0].mxu0 %v1273
    %v1346 = vpop.f32.mrb[0].mxu0
    %v1347 = vadd.f32 0.0, %v1346
    %v1348 = vpop.f32.mrb[0].mxu0
    %1349 = vdwg.mxu0
    %v1350 = vsub.f32 %v1077, %v1259
    %v1351 = vsub.f32 %v1078, %v1262
    %v1352 = vmul.f32 %v1350, 1.442695
    %v1353 = vpow.pop %v1352
    %v1354 = vmul.f32 %v1351, 1.442695
    %v1355 = vpow.pop %v1354
    %v1356 = vrcp.pop %v1342
    %v1357 = vrcp.pop %v1347
    %v1358 = vmul.f32 %v1353, %v1356
    %v1359 = vmul.f32 %v1355, %v1357
    %v1361 = vsel %vm569, %v1358, 0
    %v1364 = vsel %vm569, %v1359, 0
    %1366 = vmatprep.subr.mxu0 0.0
    %1367 = vmatpush1.xpose.msra.mxu0 %v577
    %1368 = vmatprep.subr.mxu0 0.0
    %1369 = vmatpush1.xpose.msra.mxu0 %v580
    %1370 = vmatprep.subr.mxu0 0.0
    %1371 = vmatpush1.xpose.msra.mxu0 %v583
    %1372 = vmatprep.subr.mxu0 0.0
    %1373 = vmatpush1.xpose.msra.mxu0 %v586
    %1374 = vmatprep.subr.mxu0 0.0
    %1375 = vmatpush1.xpose.msra.mxu0 0.0
    %1376 = vmatprep.subr.mxu0 0.0
    %1377 = vmatpush1.xpose.msra.mxu0 0.0
    %1378 = vmatprep.subr.mxu0 0.0
    %1379 = vmatpush1.xpose.msra.mxu0 0.0
    %1380 = vmatprep.subr.mxu0 0.0
    %1381 = vmatpush1.xpose.msra.mxu0 0.0
    %1382 = vmatprep.subr.mxu0 0.0
    %1383 = vmatpush1.xpose.msra.mxu0 0.0
    %1384 = vmatprep.subr.mxu0 0.0
    %1385 = vmatpush1.xpose.msra.mxu0 0.0
    %1386 = vmatprep.subr.mxu0 0.0
    %1387 = vmatpush1.xpose.msra.mxu0 0.0
    %1388 = vmatprep.subr.mxu0 0.0
    %1389 = vmatpush1.xpose.msra.mxu0 0.0
    %1390 = vmatprep.subr.mxu0 0.0
    %1391 = vmatpush1.xpose.msra.mxu0 0.0
    %1392 = vmatprep.subr.mxu0 0.0
    %1393 = vmatpush1.xpose.msra.mxu0 0.0
    %1394 = vmatprep.subr.mxu0 0.0
    %1395 = vmatpush1.xpose.msra.mxu0 0.0
    %1396 = vmatprep.subr.mxu0 0.0
    %1397 = vmatpush1.xpose.msra.mxu0 0.0
    %1398 = vmatprep.subr.mxu0 0.0
    %1399 = vmatpush1.xpose.msra.mxu0 0.0
    %1400 = vmatprep.subr.mxu0 0.0
    %1401 = vmatpush1.xpose.msra.mxu0 0.0
    %1402 = vmatprep.subr.mxu0 0.0
    %1403 = vmatpush1.xpose.msra.mxu0 0.0
    %1404 = vmatprep.subr.mxu0 0.0
    %1405 = vmatpush1.xpose.msra.mxu0 0.0
    %1406 = vmatprep.subr.mxu0 0.0
    %1407 = vmatpush1.xpose.msra.mxu0 0.0
    %1408 = vmatprep.subr.mxu0 0.0
    %1409 = vmatpush1.xpose.msra.mxu0 0.0
    %1410 = vmatprep.subr.mxu0 0.0
    %1411 = vmatpush1.xpose.msra.mxu0 0.0
    %1412 = vmatprep.subr.mxu0 0.0
    %1413 = vmatpush1.xpose.msra.mxu0 0.0
    %1414 = vmatprep.subr.mxu0 0.0
    %1415 = vmatpush1.xpose.msra.mxu0 0.0
    %1416 = vmatprep.subr.mxu0 0.0
    %1417 = vmatpush1.xpose.msra.mxu0 0.0
    %1418 = vmatprep.subr.mxu0 0.0
    %1419 = vmatpush1.xpose.msra.mxu0 0.0
    %1420 = vmatprep.subr.mxu0 0.0
    %1421 = vmatpush1.xpose.msra.mxu0 0.0
    %1422 = vmatprep.subr.mxu0 0.0
    %1423 = vmatpush1.xpose.msra.mxu0 0.0
    %1424 = vmatprep.subr.mxu0 0.0
    %1425 = vmatpush1.xpose.msra.mxu0 0.0
    %1426 = vmatprep.subr.mxu0 0.0
    %1427 = vmatpush1.xpose.msra.mxu0 0.0
    %1428 = vmatprep.subr.mxu0 0.0
    %1429 = vmatpush1.xpose.msra.mxu0 0.0
    %1430 = vmatprep.mubr.f32.mxu0 0.0
    %1431 = vmatmul.mubr.f32.gmra.mrb[0].mxu0 %v1361
    %v1432 = vpop.f32.mrb[0].mxu0
    %v1433 = vadd.f32 0.0, %v1432
    %v1434 = vpop.f32.mrb[0].mxu0
    %1435 = vmatprep.mubr.f32.mxu0 0.0
    %1436 = vmatmul.mubr.f32.gmra.mrb[0].mxu0 %v1364
    %v1437 = vpop.f32.mrb[0].mxu0
    %v1438 = vadd.f32 0.0, %v1437
    %v1439 = vpop.f32.mrb[0].mxu0
    %1440 = vdwg.mxu0
    %1443 = vrot.lane.b32.xlu0 %v1433, 64
    %v1444 = vpop.permute.xlu0 %1443
    %1445 = vrot.lane.b32.xlu0 %v1438, 64
    %v1446 = vpop.permute.xlu0 %1445
    %v1449 = vmul.f32 %v978, %v1444
    %v1450 = vmul.f32 %v981, %v1446
    %v1451 = vpack.c.bf16 %v1450, %v1449
    %1453 = vrot.lane.b32.xlu0 %v1451, 64
    %v1454 = vpop.permute.xlu0 %1453
    %1455 = vrot.lane.b32.xlu0 %v936, 32
    %v1456 = vpop.permute.xlu0 %1455
    %1457 = vrot.lane.b32.xlu0 %v937, 32
    %v1458 = vpop.permute.xlu0 %1457
    %v1462 = vsel %vm112, %v1454, 0
    %1464 = vmatprep.subr.bf16.mxu0 0
    %1465 = vmatpush1.bf16.msra.mxu0 %v1456
    %1466 = vmatprep.subr.bf16.mxu0 0
    %1467 = vmatpush1.bf16.msra.mxu0 %v1458
    %1468 = vmatprep.subr.bf16.mxu0 0
    %1469 = vmatpush1.bf16.msra.mxu0 0
    %1470 = vmatprep.subr.bf16.mxu0 0
    %1471 = vmatpush1.bf16.msra.mxu0 0
    %1472 = vmatprep.subr.bf16.mxu0 0
    %1473 = vmatpush1.bf16.msra.mxu0 0
    %1474 = vmatprep.subr.bf16.mxu0 0
    %1475 = vmatpush1.bf16.msra.mxu0 0
    %1476 = vmatprep.subr.bf16.mxu0 0
    %1477 = vmatpush1.bf16.msra.mxu0 0
    %1478 = vmatprep.subr.bf16.mxu0 0
    %1479 = vmatpush1.bf16.msra.mxu0 0
    %1480 = vmatprep.subr.bf16.mxu0 0
    %1481 = vmatpush1.bf16.msra.mxu0 0
    %1482 = vmatprep.subr.bf16.mxu0 0
    %1483 = vmatpush1.bf16.msra.mxu0 0
    %1484 = vmatprep.subr.bf16.mxu0 0
    %1485 = vmatpush1.bf16.msra.mxu0 0
    %1486 = vmatprep.subr.bf16.mxu0 0
    %1487 = vmatpush1.bf16.msra.mxu0 0
    %1488 = vmatprep.subr.bf16.mxu0 0
    %1489 = vmatpush1.bf16.msra.mxu0 0
    %1490 = vmatprep.subr.bf16.mxu0 0
    %1491 = vmatpush1.bf16.msra.mxu0 0
    %1492 = vmatprep.subr.bf16.mxu0 0
    %1493 = vmatpush1.bf16.msra.mxu0 0
    %1494 = vmatprep.subr.bf16.mxu0 0
    %1495 = vmatpush1.bf16.msra.mxu0 0
    %1496 = vmatprep.mubr.bf16.mxu0 0
    %1497 = vmatmul.mubr.bf16.gmra.mrb[0].mxu0 %v1462
    %v1498 = vpop.f32.mrb[0].mxu0
    %v1499 = vadd.f32 %v920, %v1498
    %v1500 = vpop.f32.mrb[0].mxu0
    %v1501 = vpop.f32.mrb[0].mxu0
    %v1502 = vadd.f32 %v921, %v1501
    %v1503 = vpop.f32.mrb[0].mxu0
    %1504 = vdwg.mxu0
    %v1505 = vsel %vm112, %v1499, 0.0
    %1506 = vadd.xlane.f32.xlu0 %v1505
    %v1507 = vpop.xlane.xlu0 %1506
    %v1508 = vsel %vm112, %v1502, 0.0
    %1509 = vadd.xlane.f32.xlu0 %v1508
    %v1510 = vpop.xlane.xlu0 %1509
    %v1511 = vmul.f32 %v1507, %v733
    %v1512 = vmul.f32 %v1510, %v733
    %v1513 = vsub.f32 %v1499, %v1511
    %v1514 = vsub.f32 %v1502, %v1512
    %v1515 = vmul.f32 %v1513, %v1513
    %v1516 = vmul.f32 %v1514, %v1514
    %v1517 = vsel %vm112, %v1515, 0.0
    %1518 = vadd.xlane.f32.xlu0 %v1517
    %v1519 = vpop.xlane.xlu0 %1518
    %v1520 = vsel %vm112, %v1516, 0.0
    %1521 = vadd.xlane.f32.xlu0 %v1520
    %v1522 = vpop.xlane.xlu0 %1521
    %v1523 = vmul.f32 %v1519, %v733
    %v1524 = vmul.f32 %v1522, %v733
    %v1525 = vadd.f32 %v1523, 1e-05
    %v1526 = vadd.f32 %v1524, 1e-05
    %v1527 = vrsqrt.pop %v1525
    %v1528 = vrsqrt.pop %v1526
    %v1529 = vmul.f32 %v1513, %v1527
    %v1530 = vmul.f32 %v1514, %v1528
    %v1531 = vlaneseq
    %v1532 = vshrl.u32 %v1531, 7
    %v1533 = vsub.s32 2, %v1532
    %v1534 = vrot.slane %v92, %v1533
    %v1535 = vmul.f32 %v1529, %v1534
    %v1536 = vmul.f32 %v1530, %v1534
    %1538 = vrot.lane.b32.xlu0 %v1534, 96
    %v1539 = vpop.permute.xlu0 %1538
    %v1541 = vadd.f32 %v1535, %v1539
    %v1542 = vadd.f32 %v1536, %v1539
    %v1543 = vpack.c.bf16 %v1542, %v1541
    %v1544 = vlaneseq
    %v1545 = vshrl.u32 %v1544, 7
    %v1546 = vsub.s32 3, %v1545
    %v1547 = vrot.slane %v92, %v1546
    %v1548 = vunpack.c.h.b16 %v923
    %v1549 = vunpack.c.h.b16 %v924
    %v1550 = vunpack.c.h.b16 %v925
    %v1551 = vunpack.c.h.b16 %v926
    %v1552 = vpack.c.b16 %v1549, %v1548
    %v1553 = vpack.c.b16 %v1551, %v1550
    %v1557 = vsel %vm112, %v1543, 0
    %1559 = vmatprep.subr.bf16.mxu0 0
    %1560 = vmatpush1.bf16.msra.mxu0 %v1552
    %1561 = vmatprep.subr.bf16.mxu0 0
    %1562 = vmatpush1.bf16.msra.mxu0 %v1553
    %1563 = vmatprep.subr.bf16.mxu0 0
    %1564 = vmatpush1.bf16.msra.mxu0 0
    %1565 = vmatprep.subr.bf16.mxu0 0
    %1566 = vmatpush1.bf16.msra.mxu0 0
    %1567 = vmatprep.subr.bf16.mxu0 0
    %1568 = vmatpush1.bf16.msra.mxu0 0
    %1569 = vmatprep.subr.bf16.mxu0 0
    %1570 = vmatpush1.bf16.msra.mxu0 0
    %1571 = vmatprep.subr.bf16.mxu0 0
    %1572 = vmatpush1.bf16.msra.mxu0 0
    %1573 = vmatprep.subr.bf16.mxu0 0
    %1574 = vmatpush1.bf16.msra.mxu0 0
    %1575 = vmatprep.subr.bf16.mxu0 0
    %1576 = vmatpush1.bf16.msra.mxu0 0
    %1577 = vmatprep.subr.bf16.mxu0 0
    %1578 = vmatpush1.bf16.msra.mxu0 0
    %1579 = vmatprep.subr.bf16.mxu0 0
    %1580 = vmatpush1.bf16.msra.mxu0 0
    %1581 = vmatprep.subr.bf16.mxu0 0
    %1582 = vmatpush1.bf16.msra.mxu0 0
    %1583 = vmatprep.subr.bf16.mxu0 0
    %1584 = vmatpush1.bf16.msra.mxu0 0
    %1585 = vmatprep.subr.bf16.mxu0 0
    %1586 = vmatpush1.bf16.msra.mxu0 0
    %1587 = vmatprep.subr.bf16.mxu0 0
    %1588 = vmatpush1.bf16.msra.mxu0 0
    %1589 = vmatprep.subr.bf16.mxu0 0
    %1590 = vmatpush1.bf16.msra.mxu0 0
    %1591 = vmatprep.mubr.bf16.mxu0 0
    %1592 = vmatmul.mubr.bf16.gmra.mrb[0].mxu0 %v1557
    %v1593 = vpop.f32.mrb[0].mxu0
    %v1594 = vadd.f32 %v1547, %v1593
    %v1595 = vpop.f32.mrb[0].mxu0
    %v1596 = vpop.f32.mrb[0].mxu0
    %v1597 = vadd.f32 %v1547, %v1596
    %v1598 = vpop.f32.mrb[0].mxu0
    %1599 = vdwg.mxu0
    %v1600 = vmax.f32 %v1594, 0.0
    %v1601 = vmax.f32 %v1597, 0.0
    %v1602 = vpack.c.bf16 %v1601, %v1600
    %1603 = vrot.lane.b32.xlu0 %v1552, 64
    %v1604 = vpop.permute.xlu0 %1603
    %1605 = vrot.lane.b32.xlu0 %v1553, 64
    %v1606 = vpop.permute.xlu0 %1605
    %1608 = vrot.lane.b32.xlu0 %v1547, 64
    %v1609 = vpop.permute.xlu0 %1608
    %v1612 = vsel %vm465, %v1602, 0
    %v1615 = vsel %vm465, %v1604, 0
    %v1618 = vsel %vm465, %v1606, 0
    %1620 = vmatprep.subr.bf16.mxu0 0
    %1621 = vmatpush1.bf16.xpose.msra.mxu0 %v1615
    %1622 = vmatprep.subr.bf16.mxu0 0
    %1623 = vmatpush1.bf16.xpose.msra.mxu0 %v1618
    %1624 = vmatprep.subr.bf16.mxu0 0
    %1625 = vmatpush1.bf16.xpose.msra.mxu0 0
    %1626 = vmatprep.subr.bf16.mxu0 0
    %1627 = vmatpush1.bf16.xpose.msra.mxu0 0
    %1628 = vmatprep.subr.bf16.mxu0 0
    %1629 = vmatpush1.bf16.xpose.msra.mxu0 0
    %1630 = vmatprep.subr.bf16.mxu0 0
    %1631 = vmatpush1.bf16.xpose.msra.mxu0 0
    %1632 = vmatprep.subr.bf16.mxu0 0
    %1633 = vmatpush1.bf16.xpose.msra.mxu0 0
    %1634 = vmatprep.subr.bf16.mxu0 0
    %1635 = vmatpush1.bf16.xpose.msra.mxu0 0
    %1636 = vmatprep.subr.bf16.mxu0 0
    %1637 = vmatpush1.bf16.xpose.msra.mxu0 0
    %1638 = vmatprep.subr.bf16.mxu0 0
    %1639 = vmatpush1.bf16.xpose.msra.mxu0 0
    %1640 = vmatprep.subr.bf16.mxu0 0
    %1641 = vmatpush1.bf16.xpose.msra.mxu0 0
    %1642 = vmatprep.subr.bf16.mxu0 0
    %1643 = vmatpush1.bf16.xpose.msra.mxu0 0
    %1644 = vmatprep.subr.bf16.mxu0 0
    %1645 = vmatpush1.bf16.xpose.msra.mxu0 0
    %1646 = vmatprep.subr.bf16.mxu0 0
    %1647 = vmatpush1.bf16.xpose.msra.mxu0 0
    %1648 = vmatprep.subr.bf16.mxu0 0
    %1649 = vmatpush1.bf16.xpose.msra.mxu0 0
    %1650 = vmatprep.subr.bf16.mxu0 0
    %1651 = vmatpush1.bf16.xpose.msra.mxu0 0
    %1652 = vmatprep.mubr.bf16.mxu0 0
    %1653 = vmatmul.mubr.bf16.gmra.mrb[0].mxu0 %v1612
    %v1654 = vpop.f32.mrb[0].mxu0
    %v1655 = vadd.f32 %v1609, %v1654
    %v1656 = vpop.f32.mrb[0].mxu0
    %v1657 = vpop.f32.mrb[0].mxu0
    %v1658 = vadd.f32 %v1609, %v1657
    %v1659 = vpop.f32.mrb[0].mxu0
    %1660 = vdwg.mxu0
    %v1661 = vadd.f32 %v1655, %v1541
    %v1662 = vadd.f32 %v1658, %v1542
    %v1663 = vsel %vm112, %v1661, 0.0
    %1664 = vadd.xlane.f32.xlu0 %v1663
    %v1665 = vpop.xlane.xlu0 %1664
    %v1666 = vsel %vm112, %v1662, 0.0
    %1667 = vadd.xlane.f32.xlu0 %v1666
    %v1668 = vpop.xlane.xlu0 %1667
    %v1669 = vmul.f32 %v1665, %v733
    %v1670 = vmul.f32 %v1668, %v733
    %v1671 = vsub.f32 %v1661, %v1669
    %v1672 = vsub.f32 %v1662, %v1670
    %v1673 = vmul.f32 %v1671, %v1671
    %v1674 = vmul.f32 %v1672, %v1672
    %v1675 = vsel %vm112, %v1673, 0.0
    %1676 = vadd.xlane.f32.xlu0 %v1675
    %v1677 = vpop.xlane.xlu0 %1676
    %v1678 = vsel %vm112, %v1674, 0.0
    %1679 = vadd.xlane.f32.xlu0 %v1678
    %v1680 = vpop.xlane.xlu0 %1679
    %v1681 = vmul.f32 %v1677, %v733
    %v1682 = vmul.f32 %v1680, %v733
    %v1683 = vadd.f32 %v1681, 1e-05
    %v1684 = vadd.f32 %v1682, 1e-05
    %v1685 = vrsqrt.pop %v1683
    %v1686 = vrsqrt.pop %v1684
    %v1687 = vmul.f32 %v1671, %v1685
    %v1688 = vmul.f32 %v1672, %v1686
    %1689 = vrot.lane.b32.xlu0 %v1534, 64
    %v1690 = vpop.permute.xlu0 %1689
    %v1692 = vmul.f32 %v1687, %v1690
    %v1693 = vmul.f32 %v1688, %v1690
    %1694 = vrot.lane.b32.xlu0 %v1534, 32
    %v1695 = vpop.permute.xlu0 %1694
    %v1697 = vadd.f32 %v1692, %v1695
    %v1698 = vadd.f32 %v1693, %v1695
    %v1699 = vmul.f32 %v1697, %v89
    %v1700 = vmul.f32 %v1698, %v90
    %v1702 = vsel %vm262, %v84, 0
    %1704 = vmatprep.subr.mxu0 0.0
    %1705 = vmatpush1.msra.mxu0 %v1699
    %1706 = vmatprep.subr.mxu0 0.0
    %1707 = vmatpush1.msra.mxu0 %v1700
    %1708 = vmatprep.subr.mxu0 0.0
    %1709 = vmatpush1.msra.mxu0 0.0
    %1710 = vmatprep.subr.mxu0 0.0
    %1711 = vmatpush1.msra.mxu0 0.0
    %1712 = vmatprep.subr.mxu0 0.0
    %1713 = vmatpush1.msra.mxu0 0.0
    %1714 = vmatprep.subr.mxu0 0.0
    %1715 = vmatpush1.msra.mxu0 0.0
    %1716 = vmatprep.subr.mxu0 0.0
    %1717 = vmatpush1.msra.mxu0 0.0
    %1718 = vmatprep.subr.mxu0 0.0
    %1719 = vmatpush1.msra.mxu0 0.0
    %1720 = vmatprep.subr.mxu0 0.0
    %1721 = vmatpush1.msra.mxu0 0.0
    %1722 = vmatprep.subr.mxu0 0.0
    %1723 = vmatpush1.msra.mxu0 0.0
    %1724 = vmatprep.subr.mxu0 0.0
    %1725 = vmatpush1.msra.mxu0 0.0
    %1726 = vmatprep.subr.mxu0 0.0
    %1727 = vmatpush1.msra.mxu0 0.0
    %1728 = vmatprep.subr.mxu0 0.0
    %1729 = vmatpush1.msra.mxu0 0.0
    %1730 = vmatprep.subr.mxu0 0.0
    %1731 = vmatpush1.msra.mxu0 0.0
    %1732 = vmatprep.subr.mxu0 0.0
    %1733 = vmatpush1.msra.mxu0 0.0
    %1734 = vmatprep.subr.mxu0 0.0
    %1735 = vmatpush1.msra.mxu0 0.0
    %1736 = vmatprep.subr.mxu0 0.0
    %1737 = vmatpush1.msra.mxu0 0.0
    %1738 = vmatprep.subr.mxu0 0.0
    %1739 = vmatpush1.msra.mxu0 0.0
    %1740 = vmatprep.subr.mxu0 0.0
    %1741 = vmatpush1.msra.mxu0 0.0
    %1742 = vmatprep.subr.mxu0 0.0
    %1743 = vmatpush1.msra.mxu0 0.0
    %1744 = vmatprep.subr.mxu0 0.0
    %1745 = vmatpush1.msra.mxu0 0.0
    %1746 = vmatprep.subr.mxu0 0.0
    %1747 = vmatpush1.msra.mxu0 0.0
    %1748 = vmatprep.subr.mxu0 0.0
    %1749 = vmatpush1.msra.mxu0 0.0
    %1750 = vmatprep.subr.mxu0 0.0
    %1751 = vmatpush1.msra.mxu0 0.0
    %1752 = vmatprep.subr.mxu0 0.0
    %1753 = vmatpush1.msra.mxu0 0.0
    %1754 = vmatprep.subr.mxu0 0.0
    %1755 = vmatpush1.msra.mxu0 0.0
    %1756 = vmatprep.subr.mxu0 0.0
    %1757 = vmatpush1.msra.mxu0 0.0
    %1758 = vmatprep.subr.mxu0 0.0
    %1759 = vmatpush1.msra.mxu0 0.0
    %1760 = vmatprep.subr.mxu0 0.0
    %1761 = vmatpush1.msra.mxu0 0.0
    %1762 = vmatprep.subr.mxu0 0.0
    %1763 = vmatpush1.msra.mxu0 0.0
    %1764 = vmatprep.subr.mxu0 0.0
    %1765 = vmatpush1.msra.mxu0 0.0
    %1766 = vmatprep.subr.mxu0 0.0
    %1767 = vmatpush1.msra.mxu0 0.0
    %1768 = vmatprep.mubr.f32.mxu0 0.0
    %1769 = vmatmul.mubr.f32.gmra.mrb[0].mxu0 %v1702
    %v1770 = vpop.f32.mrb[0].mxu0
    %v1771 = vadd.f32 0.0, %v1770
    %v1772 = vpop.f32.mrb[0].mxu0
    %1773 = vdwg.mxu0
    %vm1774 = vcmask 254976
    %v1775 = vsel %vm1774, %v1771, 0.0
    %1776 = vadd.xlane.f32.xlu0 %v1775
    %v1777 = vpop.xlane.xlu0 %1776
    %v1778 = vlaneseq
    %v1779 = vshrl.u32 %v1778, 7
    %v1780 = vsub.s32 0, %v1779
    %v1781 = vrot.slane %v91, %v1780
    %v1782 = vadd.f32 %v1777, %v1781
    %vm1783 = vcmask 1024
    %1784 = vst.msk [vmem:[%s3] sm:$0x3] %vm1783, %v1782
    // Predicated region
    $region26: #{forward.1} parent=1 // pred_check
      _
    $region27: #{forward.1} parent=1 // pred_check_branch
      %1786 = sbr.rel (0) target = $region29
    $region28: #{forward.1} parent=1 // pred_region
      _
    $region29: #{forward.1} parent=1 // pred_fallthru
      _
    // Predicated region
    $region30: #{forward.1} parent=1 // pred_check
      _
    $region31: #{forward.1} parent=1 // pred_check_branch
      %1788 = sbr.rel (0) target = $region33
    $region32: #{forward.1} parent=1 // pred_region
      _
    $region33: #{forward.1} parent=1 // pred_fallthru
      _
    %1789 = vsyncpa [#allocation3], 1
    %1790 = vsyncpa [#allocation5], 1

</llo_original>
